<compile_context>
chip_gen: v7x
topology: tpu7x:2x2x1
jax: 0.10.0
libtpu: 0.0.40
codegen_flags: <defaults>
</compile_context>

<pallas_src>
import math

import jax
import jax.numpy as jnp
from jax import lax
from jax.experimental import pallas as pl
from jax.experimental.pallas import tpu as pltpu

B, SQ, SK, HIDDEN = 2, 64, 128, 128  # H must equal SK (see note above)


def _attn_kernel(x1_ref, x2_ref, mask_ref, wq_ref, wkv_ref, out_ref):
    # x1_ref  : (B, SQ, H)  f32   query input
    # x2_ref  : (B, SK, H)  f32   key/value input
    # mask_ref: (B, SQ, SK) i32   nonzero => masked
    # wq_ref  : (H, H)      bf16  Wq^T * 1/sqrt(H)   (x @ W layout)
    # wkv_ref : (H, 2H)     bf16  [Wk^T | Wv^T] fused
    # out_ref : (B, SK, SQ) bf16  module's output layout (no post-kernel swap)
    bb, _, h = x1_ref.shape

    wq = wq_ref[...]
    wkv = wkv_ref[...]

    for bi in range(bb):  # static, unrolled (bb == 2)
        x1b = x1_ref[bi].astype(jnp.bfloat16)          # (SQ, H)
        x2b = x2_ref[bi].astype(jnp.bfloat16)          # (SK, H)

        q = jnp.dot(x1b, wq,
                    preferred_element_type=jnp.float32).astype(jnp.bfloat16)
        kv = jnp.dot(x2b, wkv,
                     preferred_element_type=jnp.float32).astype(jnp.bfloat16)
        k = kv[:, :h]                                   # (SK, H)
        v = kv[:, h:]                                   # (SK, H)

        # scores = q @ k^T (scale folded into Wq); contract last dims so the
        # MXU consumes both operands without an XLU transpose.
        s = lax.dot_general(q, k, (((1,), (1,)), ((), ())),
                            preferred_element_type=jnp.float32)  # (SQ, SK)
        # masked_fill_(mask, -inf): large-finite negative avoids NaN for a
        # (probability ~2^-128) fully-masked row; identical otherwise.
        s = jnp.where(mask_ref[bi] != 0, jnp.float32(-1e30), s)

        m = jnp.max(s, axis=-1, keepdims=True)
        p = jnp.exp(s - m)
        inv = pl.reciprocal(jnp.sum(p, axis=-1, keepdims=True), approx=True)
        attn_w = (p * inv).astype(jnp.bfloat16)         # (SQ, SK)

        # out[b] = v @ attn_w^T  (contraction over H == SK) -> (SK, SQ),
        # stored directly in the module's output layout.
        out_ref[bi] = lax.dot_general(
            v, attn_w, (((1,), (1,)), ((), ())),
            preferred_element_type=jnp.float32).astype(out_ref.dtype)


def prepare_params(wq, wk, wv):
    """One-time weight preparation (hoisted out of the per-call hot path)."""
    h = wq.shape[0]
    scale = 1.0 / math.sqrt(h)
    wq_p = (wq.T * scale).astype(jnp.bfloat16)                          # (H, H)
    wkv_p = jnp.concatenate([wk.T, wv.T], axis=1).astype(jnp.bfloat16)  # (H, 2H)
    return wq_p, wkv_p


def model_forward(x1, x2, mask, wq_p, wkv_p):
    b, sq, h = x1.shape
    _, sk, _ = x2.shape
    assert h == sk, "final contraction v @ aw^T requires H == SK"

    return pl.pallas_call(
        _attn_kernel,
        out_shape=jax.ShapeDtypeStruct((b, sk, sq), jnp.bfloat16),
        grid_spec=pltpu.PrefetchScalarGridSpec(
            num_scalar_prefetch=0,
            grid=(1,),  # tiny, launch-bound problem: single step, whole arrays
            in_specs=[
                pl.BlockSpec((b, sq, h), lambda i: (0, 0, 0)),     # x1 (f32)
                pl.BlockSpec((b, sk, h), lambda i: (0, 0, 0)),     # x2 (f32)
                pl.BlockSpec((b, sq, sk), lambda i: (0, 0, 0)),    # raw mask
                pl.BlockSpec((h, h), lambda i: (0, 0)),            # Wq (scaled)
                pl.BlockSpec((h, 2 * h), lambda i: (0, 0)),        # [Wk|Wv]
            ],
            out_specs=pl.BlockSpec((b, sk, sq), lambda i: (0, 0, 0)),
        ),
        compiler_params=pltpu.CompilerParams(
            dimension_semantics=("arbitrary",)),
    )(x1, x2, mask, wq_p, wkv_p)


if __name__ == "__main__":
    key = jax.random.PRNGKey(0)
    k1, k2, k3, kq, kk, kv_key = jax.random.split(key, 6)

    x1 = jax.random.normal(k1, (B, SQ, HIDDEN), dtype=jnp.float32)
    x2 = jax.random.normal(k2, (B, SK, HIDDEN), dtype=jnp.float32)
    mask = jax.random.randint(k3, (B, SQ, SK), 0, 2, dtype=jnp.int32)

    # Deterministic Linear weights (torch default-ish uniform init scale).
    bound = 1.0 / math.sqrt(HIDDEN)
    wq = jax.random.uniform(kq, (HIDDEN, HIDDEN), jnp.float32, -bound, bound)
    wk = jax.random.uniform(kk, (HIDDEN, HIDDEN), jnp.float32, -bound, bound)
    wv = jax.random.uniform(kv_key, (HIDDEN, HIDDEN), jnp.float32, -bound, bound)

    # Init-time weight prep (runs once, not part of the per-call path).
    wq_p, wkv_p = jax.block_until_ready(prepare_params(wq, wk, wv))

    forward = jax.jit(model_forward)
    out = forward(x1, x2, mask, wq_p, wkv_p)
    jax.block_until_ready(out)

    # Pure-JAX f32 reference mirroring the PyTorch forward.
    q = x1 @ wq.T
    k = x2 @ wk.T
    v = x2 @ wv.T
    qk = (q @ jnp.swapaxes(k, -2, -1)) / math.sqrt(HIDDEN)
    qk = jnp.where(mask != 0, -jnp.inf, qk)
    aw = jax.nn.softmax(qk, axis=-1)
    ref = v @ jnp.swapaxes(aw, -2, -1)

    assert out.shape == (B, SK, SQ)
    err = float(jnp.max(jnp.abs(out.astype(jnp.float32) - ref)))
    assert err < 3e-2, f"max abs err {err}"  # bf16 operands/output, f32 accum

    print("KERNEL_OK")
</pallas_src>

<mosaic_0001>
module attributes {stable_mosaic.version = 11 : i64} {
  func.func @_attn_kernel(%arg0: i32, %arg1: memref<2x64x128xf32, #tpu.memory_space<vmem>>, %arg2: memref<2x128x128xf32, #tpu.memory_space<vmem>>, %arg3: memref<2x64x128xi32, #tpu.memory_space<vmem>>, %arg4: memref<128x128xbf16, #tpu.memory_space<vmem>>, %arg5: memref<128x256xbf16, #tpu.memory_space<vmem>>, %arg6: memref<2x128x64xbf16, #tpu.memory_space<vmem>>) attributes {dimension_semantics = [#tpu.dimension_semantics<arbitrary>], iteration_bounds = array<i64: 1>, scalar_prefetch = 0 : i64, scratch_operands = 0 : i64, tpu.core_type = #tpu.core_type<tc>, window_params = [{pipeline_mode = #tpu.pipeline_mode<synchronous>, transform_indices = @transform_0, window_bounds = array<i64: 2, 64, 128>}, {pipeline_mode = #tpu.pipeline_mode<synchronous>, transform_indices = @transform_1, window_bounds = array<i64: 2, 128, 128>}, {pipeline_mode = #tpu.pipeline_mode<synchronous>, transform_indices = @transform_2, window_bounds = array<i64: 2, 64, 128>}, {pipeline_mode = #tpu.pipeline_mode<synchronous>, transform_indices = @transform_3, window_bounds = array<i64: 128, 128>}, {pipeline_mode = #tpu.pipeline_mode<synchronous>, transform_indices = @transform_4, window_bounds = array<i64: 128, 256>}, {pipeline_mode = #tpu.pipeline_mode<synchronous>, transform_indices = @transform_5, window_bounds = array<i64: 2, 128, 64>}]} {
    %c0 = arith.constant 0 : index
    %c0_0 = arith.constant 0 : index
    %0 = vector.load %arg4[%c0, %c0_0] : memref<128x128xbf16, #tpu.memory_space<vmem>>, vector<128x128xbf16>
    %c0_1 = arith.constant 0 : index
    %c0_2 = arith.constant 0 : index
    %1 = vector.load %arg5[%c0_1, %c0_2] : memref<128x256xbf16, #tpu.memory_space<vmem>>, vector<128x256xbf16>
    %c0_3 = arith.constant 0 : index
    %c0_4 = arith.constant 0 : index
    %c0_5 = arith.constant 0 : index
    %2 = vector.load %arg1[%c0_3, %c0_4, %c0_5] : memref<2x64x128xf32, #tpu.memory_space<vmem>>, vector<1x64x128xf32>
    %3 = vector.shape_cast %2 : vector<1x64x128xf32> to vector<64x128xf32>
    %4 = arith.truncf %3 : vector<64x128xf32> to vector<64x128xbf16>
    %c0_6 = arith.constant 0 : index
    %c0_7 = arith.constant 0 : index
    %c0_8 = arith.constant 0 : index
    %5 = vector.load %arg2[%c0_6, %c0_7, %c0_8] : memref<2x128x128xf32, #tpu.memory_space<vmem>>, vector<1x128x128xf32>
    %6 = vector.shape_cast %5 : vector<1x128x128xf32> to vector<128x128xf32>
    %7 = arith.truncf %6 : vector<128x128xf32> to vector<128x128xbf16>
    %cst = arith.constant dense<0.000000e+00> : vector<64x128xf32>
    %8 = tpu.matmul %4, %0, %cst {dimension_numbers = #tpu.dot_dimension_numbers<[1], [0], [0], [1], [0, 0, 1, 1], [], []>} : vector<64x128xbf16>, vector<128x128xbf16>, vector<64x128xf32> -> vector<64x128xf32>
    %9 = arith.truncf %8 : vector<64x128xf32> to vector<64x128xbf16>
    %cst_9 = arith.constant dense<0.000000e+00> : vector<128x256xf32>
    %10 = tpu.matmul %7, %1, %cst_9 {dimension_numbers = #tpu.dot_dimension_numbers<[1], [0], [0], [1], [0, 0, 1, 1], [], []>} : vector<128x128xbf16>, vector<128x256xbf16>, vector<128x256xf32> -> vector<128x256xf32>
    %11 = arith.truncf %10 : vector<128x256xf32> to vector<128x256xbf16>
    %12 = vector.extract_strided_slice %11 {offsets = [0, 0], sizes = [128, 128], strides = [1, 1]} : vector<128x256xbf16> to vector<128x128xbf16>
    %13 = vector.extract_strided_slice %11 {offsets = [0, 128], sizes = [128, 128], strides = [1, 1]} : vector<128x256xbf16> to vector<128x128xbf16>
    %cst_10 = arith.constant dense<0.000000e+00> : vector<64x128xf32>
    %14 = tpu.matmul %9, %12, %cst_10 {dimension_numbers = #tpu.dot_dimension_numbers<[1], [1], [0], [0], [0, 0, 1, 0], [], []>} : vector<64x128xbf16>, vector<128x128xbf16>, vector<64x128xf32> -> vector<64x128xf32>
    %c0_11 = arith.constant 0 : index
    %c0_12 = arith.constant 0 : index
    %c0_13 = arith.constant 0 : index
    %15 = vector.load %arg3[%c0_11, %c0_12, %c0_13] : memref<2x64x128xi32, #tpu.memory_space<vmem>>, vector<1x64x128xi32>
    %16 = vector.shape_cast %15 : vector<1x64x128xi32> to vector<64x128xi32>
    %c0_i32 = arith.constant 0 : i32
    %17 = vector.broadcast %c0_i32 : i32 to vector<64x128xi32>
    %18 = arith.cmpi ne, %16, %17 : vector<64x128xi32>
    %cst_14 = arith.constant -1.000000e+30 : f32
    %19 = vector.broadcast %cst_14 : f32 to vector<64x128xf32>
    %20 = arith.select %18, %19, %14 : vector<64x128xi1>, vector<64x128xf32>
    %cst_15 = arith.constant dense<0xFF800000> : vector<64xf32>
    %21 = vector.multi_reduction <maximumf>, %20, %cst_15 [1] : vector<64x128xf32> to vector<64xf32>
    %22 = vector.shape_cast %21 : vector<64xf32> to vector<64x1xf32>
    %23 = vector.broadcast %22 : vector<64x1xf32> to vector<64x128xf32>
    %24 = arith.subf %20, %23 : vector<64x128xf32>
    %25 = math.exp %24 : vector<64x128xf32>
    %cst_16 = arith.constant dense<0.000000e+00> : vector<64xf32>
    %26 = vector.multi_reduction <add>, %25, %cst_16 [1] : vector<64x128xf32> to vector<64xf32>
    %27 = vector.shape_cast %26 : vector<64xf32> to vector<64x1xf32>
    %28 = tpu.reciprocal %27 {approx = true} : vector<64x1xf32> -> vector<64x1xf32>
    %29 = vector.broadcast %28 : vector<64x1xf32> to vector<64x128xf32>
    %30 = arith.mulf %25, %29 : vector<64x128xf32>
    %31 = arith.truncf %30 : vector<64x128xf32> to vector<64x128xbf16>
    %cst_17 = arith.constant dense<0.000000e+00> : vector<128x64xf32>
    %32 = tpu.matmul %13, %31, %cst_17 {dimension_numbers = #tpu.dot_dimension_numbers<[1], [1], [0], [0], [0, 0, 1, 0], [], []>} : vector<128x128xbf16>, vector<64x128xbf16>, vector<128x64xf32> -> vector<128x64xf32>
    %33 = arith.truncf %32 : vector<128x64xf32> to vector<128x64xbf16>
    %c0_18 = arith.constant 0 : index
    %c0_19 = arith.constant 0 : index
    %c0_20 = arith.constant 0 : index
    %34 = vector.load %arg6[%c0_18, %c0_19, %c0_20] : memref<2x128x64xbf16, #tpu.memory_space<vmem>>, vector<1x128x64xbf16>
    %35 = vector.shape_cast %34 : vector<1x128x64xbf16> to vector<128x64xbf16>
    %36 = vector.shape_cast %33 : vector<128x64xbf16> to vector<1x128x64xbf16>
    tpu.vector_store %arg6[%c0_18, %c0_19, %c0_20], %36 {strides = array<i32>} : memref<2x128x64xbf16, #tpu.memory_space<vmem>>, vector<1x128x64xbf16>,
    %c1 = arith.constant 1 : index
    %c0_21 = arith.constant 0 : index
    %c0_22 = arith.constant 0 : index
    %37 = vector.load %arg1[%c1, %c0_21, %c0_22] : memref<2x64x128xf32, #tpu.memory_space<vmem>>, vector<1x64x128xf32>
    %38 = vector.shape_cast %37 : vector<1x64x128xf32> to vector<64x128xf32>
    %39 = arith.truncf %38 : vector<64x128xf32> to vector<64x128xbf16>
    %c1_23 = arith.constant 1 : index
    %c0_24 = arith.constant 0 : index
    %c0_25 = arith.constant 0 : index
    %40 = vector.load %arg2[%c1_23, %c0_24, %c0_25] : memref<2x128x128xf32, #tpu.memory_space<vmem>>, vector<1x128x128xf32>
    %41 = vector.shape_cast %40 : vector<1x128x128xf32> to vector<128x128xf32>
    %42 = arith.truncf %41 : vector<128x128xf32> to vector<128x128xbf16>
    %cst_26 = arith.constant dense<0.000000e+00> : vector<64x128xf32>
    %43 = tpu.matmul %39, %0, %cst_26 {dimension_numbers = #tpu.dot_dimension_numbers<[1], [0], [0], [1], [0, 0, 1, 1], [], []>} : vector<64x128xbf16>, vector<128x128xbf16>, vector<64x128xf32> -> vector<64x128xf32>
    %44 = arith.truncf %43 : vector<64x128xf32> to vector<64x128xbf16>
    %cst_27 = arith.constant dense<0.000000e+00> : vector<128x256xf32>
    %45 = tpu.matmul %42, %1, %cst_27 {dimension_numbers = #tpu.dot_dimension_numbers<[1], [0], [0], [1], [0, 0, 1, 1], [], []>} : vector<128x128xbf16>, vector<128x256xbf16>, vector<128x256xf32> -> vector<128x256xf32>
    %46 = arith.truncf %45 : vector<128x256xf32> to vector<128x256xbf16>
    %47 = vector.extract_strided_slice %46 {offsets = [0, 0], sizes = [128, 128], strides = [1, 1]} : vector<128x256xbf16> to vector<128x128xbf16>
    %48 = vector.extract_strided_slice %46 {offsets = [0, 128], sizes = [128, 128], strides = [1, 1]} : vector<128x256xbf16> to vector<128x128xbf16>
    %cst_28 = arith.constant dense<0.000000e+00> : vector<64x128xf32>
    %49 = tpu.matmul %44, %47, %cst_28 {dimension_numbers = #tpu.dot_dimension_numbers<[1], [1], [0], [0], [0, 0, 1, 0], [], []>} : vector<64x128xbf16>, vector<128x128xbf16>, vector<64x128xf32> -> vector<64x128xf32>
    %c1_29 = arith.constant 1 : index
    %c0_30 = arith.constant 0 : index
    %c0_31 = arith.constant 0 : index
    %50 = vector.load %arg3[%c1_29, %c0_30, %c0_31] : memref<2x64x128xi32, #tpu.memory_space<vmem>>, vector<1x64x128xi32>
    %51 = vector.shape_cast %50 : vector<1x64x128xi32> to vector<64x128xi32>
    %c0_i32_32 = arith.constant 0 : i32
    %52 = vector.broadcast %c0_i32_32 : i32 to vector<64x128xi32>
    %53 = arith.cmpi ne, %51, %52 : vector<64x128xi32>
    %cst_33 = arith.constant -1.000000e+30 : f32
    %54 = vector.broadcast %cst_33 : f32 to vector<64x128xf32>
    %55 = arith.select %53, %54, %49 : vector<64x128xi1>, vector<64x128xf32>
    %cst_34 = arith.constant dense<0xFF800000> : vector<64xf32>
    %56 = vector.multi_reduction <maximumf>, %55, %cst_34 [1] : vector<64x128xf32> to vector<64xf32>
    %57 = vector.shape_cast %56 : vector<64xf32> to vector<64x1xf32>
    %58 = vector.broadcast %57 : vector<64x1xf32> to vector<64x128xf32>
    %59 = arith.subf %55, %58 : vector<64x128xf32>
    %60 = math.exp %59 : vector<64x128xf32>
    %cst_35 = arith.constant dense<0.000000e+00> : vector<64xf32>
    %61 = vector.multi_reduction <add>, %60, %cst_35 [1] : vector<64x128xf32> to vector<64xf32>
    %62 = vector.shape_cast %61 : vector<64xf32> to vector<64x1xf32>
    %63 = tpu.reciprocal %62 {approx = true} : vector<64x1xf32> -> vector<64x1xf32>
    %64 = vector.broadcast %63 : vector<64x1xf32> to vector<64x128xf32>
    %65 = arith.mulf %60, %64 : vector<64x128xf32>
    %66 = arith.truncf %65 : vector<64x128xf32> to vector<64x128xbf16>
    %cst_36 = arith.constant dense<0.000000e+00> : vector<128x64xf32>
    %67 = tpu.matmul %48, %66, %cst_36 {dimension_numbers = #tpu.dot_dimension_numbers<[1], [1], [0], [0], [0, 0, 1, 0], [], []>} : vector<128x128xbf16>, vector<64x128xbf16>, vector<128x64xf32> -> vector<128x64xf32>
    %68 = arith.truncf %67 : vector<128x64xf32> to vector<128x64xbf16>
    %c1_37 = arith.constant 1 : index
    %c0_38 = arith.constant 0 : index
    %c0_39 = arith.constant 0 : index
    %69 = vector.load %arg6[%c1_37, %c0_38, %c0_39] : memref<2x128x64xbf16, #tpu.memory_space<vmem>>, vector<1x128x64xbf16>
    %70 = vector.shape_cast %69 : vector<1x128x64xbf16> to vector<128x64xbf16>
    %71 = vector.shape_cast %68 : vector<128x64xbf16> to vector<1x128x64xbf16>
    tpu.vector_store %arg6[%c1_37, %c0_38, %c0_39], %71 {strides = array<i32>} : memref<2x128x64xbf16, #tpu.memory_space<vmem>>, vector<1x128x64xbf16>,
    return
  }
  func.func @transform_0(%arg0: i32) -> (i32, i32, i32) {
    %c0_i32 = arith.constant 0 : i32
    %c0_i32_0 = arith.constant 0 : i32
    %c0_i32_1 = arith.constant 0 : i32
    %c0_i32_2 = arith.constant 0 : i32
    return %c0_i32, %c0_i32_0, %c0_i32_1 : i32, i32, i32
  }
  func.func @transform_1(%arg0: i32) -> (i32, i32, i32) {
    %c0_i32 = arith.constant 0 : i32
    %c0_i32_0 = arith.constant 0 : i32
    %c0_i32_1 = arith.constant 0 : i32
    %c0_i32_2 = arith.constant 0 : i32
    return %c0_i32, %c0_i32_0, %c0_i32_1 : i32, i32, i32
  }
  func.func @transform_2(%arg0: i32) -> (i32, i32, i32) {
    %c0_i32 = arith.constant 0 : i32
    %c0_i32_0 = arith.constant 0 : i32
    %c0_i32_1 = arith.constant 0 : i32
    %c0_i32_2 = arith.constant 0 : i32
    return %c0_i32, %c0_i32_0, %c0_i32_1 : i32, i32, i32
  }
  func.func @transform_3(%arg0: i32) -> (i32, i32) {
    %c0_i32 = arith.constant 0 : i32
    %c0_i32_0 = arith.constant 0 : i32
    %c0_i32_1 = arith.constant 0 : i32
    return %c0_i32, %c0_i32_0 : i32, i32
  }
  func.func @transform_4(%arg0: i32) -> (i32, i32) {
    %c0_i32 = arith.constant 0 : i32
    %c0_i32_0 = arith.constant 0 : i32
    %c0_i32_1 = arith.constant 0 : i32
    return %c0_i32, %c0_i32_0 : i32, i32
  }
  func.func @transform_5(%arg0: i32) -> (i32, i32, i32) {
    %c0_i32 = arith.constant 0 : i32
    %c0_i32_0 = arith.constant 0 : i32
    %c0_i32_1 = arith.constant 0 : i32
    %c0_i32_2 = arith.constant 0 : i32
    return %c0_i32, %c0_i32_0, %c0_i32_1 : i32, i32, i32
  }
}

</mosaic_0001>

<llo_original>
// kernel: model_forward.1
$region0: #{model_forward.1}
  #allocation0 [shape = 'u32[]', space=smem, size = 0x4, offset = 0x4, fixed_abs, tag = 'smem constant byte address 0x4 - core index']
  #allocation1 [shape = 'u32[144,128]{1,0:T(1,128)}', space=vmem, size = 0x12000, scoped, tag = 'internal scratch']
  %s0 = inlined_call_operand.hbm [shape: f32[2,64,128], index: 0, kind: input, shape index: {}]
  %s1 = inlined_call_operand.hbm [shape: f32[2,128,128], index: 1, kind: input, shape index: {}]
  %s2 = inlined_call_operand.hbm [shape: s32[2,64,128], index: 2, kind: input, shape index: {}]
  %s3 = inlined_call_operand.hbm [shape: bf16[128,128], index: 3, kind: input, shape index: {}]
  %s4 = inlined_call_operand.hbm [shape: bf16[128,256], index: 4, kind: input, shape index: {}]
  %s5 = inlined_call_operand.vmem [shape: bf16[2,128,64], index: 5, kind: output, shape index: {}]
  %s6 = sld [smem:[#allocation0]]
  $region50: #{model_forward.1} parent=0
    _
  %s8 = ssub.s32 1, %s6
  %s9 = scalar_select 0, %s8, %s6
  $region1: #{model_forward.1} parent=0
    #allocation2 [shape = 'u8[65536]{0}', space=vmem, size = 0x10000, scoped, tag = 'input window, operand 0, single buffered']
    #allocation3 [shape = 's32[1]{0}', space=sflag, size = 0x4, scoped, tag = 'scoped memory for model_forward.1']
    #allocation4 [shape = 'u8[131072]{0}', space=vmem, size = 0x20000, scoped, tag = 'input window, operand 1, single buffered']
    #allocation5 [shape = 's32[1]{0}', space=sflag, size = 0x4, scoped, tag = 'scoped memory for model_forward.1']
    #allocation6 [shape = 'u8[65536]{0}', space=vmem, size = 0x10000, scoped, tag = 'input window, operand 2, single buffered']
    #allocation7 [shape = 'u8[32768]{0}', space=vmem, size = 0x8000, scoped, tag = 'input window, operand 3, single buffered']
    #allocation8 [shape = 's32[1]{0}', space=sflag, size = 0x4, scoped, tag = 'scoped memory for model_forward.1']
    #allocation9 [shape = 'u8[65536]{0}', space=vmem, size = 0x10000, scoped, tag = 'input window, operand 4, single buffered']
    %10 = vsyncpa [#allocation3], 0
    %11 = vsyncpa [#allocation5], 0
    %12 = vsyncpa [#allocation8], 0
    // Predicated region
    $region2: #{model_forward.1} parent=1 // pred_check
      _
    $region3: #{model_forward.1} parent=1 // pred_check_branch
      %14 = sbr.rel (0) target = $region5
    $region4: #{model_forward.1} parent=1 // pred_region
      %s16 = ssub.s32 2048, 2048
      %17 = vsyncadd [#allocation3], %s16
      %s18 = sshll.u32 [#allocation2], 4
      %s19 = int_to_ptr.vmem [resolvable:$true] %s18
      %24 = dma.hbm_to_vmem [thread:$0]  %s0, 2048, %s19, [#allocation3], 128, 128, 8
    $region5: #{model_forward.1} parent=1 // pred_fallthru
      _
    // Predicated region
    $region6: #{model_forward.1} parent=1 // pred_check
      _
    $region7: #{model_forward.1} parent=1 // pred_check_branch
      %26 = sbr.rel (0) target = $region9
    $region8: #{model_forward.1} parent=1 // pred_region
      %s28 = ssub.s32 4096, 4096
      %29 = vsyncadd [#allocation5], %s28
      %s30 = sshll.u32 [#allocation4], 4
      %s31 = int_to_ptr.vmem [resolvable:$true] %s30
      %36 = dma.hbm_to_vmem [thread:$0]  %s1, 4096, %s31, [#allocation5], 128, 128, 8
    $region9: #{model_forward.1} parent=1 // pred_fallthru
      _
    // Predicated region
    $region10: #{model_forward.1} parent=1 // pred_check
      _
    $region11: #{model_forward.1} parent=1 // pred_check_branch
      %38 = sbr.rel (0) target = $region13
    $region12: #{model_forward.1} parent=1 // pred_region
      %s40 = ssub.s32 2048, 2048
      %41 = vsyncadd [#allocation5], %s40
      %s42 = sshll.u32 [#allocation6], 4
      %s43 = int_to_ptr.vmem [resolvable:$true] %s42
      %48 = dma.hbm_to_vmem [thread:$0]  %s2, 2048, %s43, [#allocation5], 128, 128, 8
    $region13: #{model_forward.1} parent=1 // pred_fallthru
      _
    // Predicated region
    $region14: #{model_forward.1} parent=1 // pred_check
      _
    $region15: #{model_forward.1} parent=1 // pred_check_branch
      %50 = sbr.rel (0) target = $region17
    $region16: #{model_forward.1} parent=1 // pred_region
      %s52 = ssub.s32 1024, 1024
      %53 = vsyncadd [#allocation8], %s52
      %s54 = sshll.u32 [#allocation7], 4
      %s55 = int_to_ptr.vmem [resolvable:$true] %s54
      %60 = dma.hbm_to_vmem [thread:$0]  %s3, 1024, %s55, [#allocation8], 64, 64, 4
    $region17: #{model_forward.1} parent=1 // pred_fallthru
      _
    // Predicated region
    $region18: #{model_forward.1} parent=1 // pred_check
      _
    $region19: #{model_forward.1} parent=1 // pred_check_branch
      %62 = sbr.rel (0) target = $region21
    $region20: #{model_forward.1} parent=1 // pred_region
      %s64 = ssub.s32 2048, 2048
      %65 = vsyncadd [#allocation8], %s64
      %s66 = sshll.u32 [#allocation9], 4
      %s67 = int_to_ptr.vmem [resolvable:$true] %s66
      %72 = dma.hbm_to_vmem [thread:$0]  %s4, 2048, %s67, [#allocation8], 128, 128, 8
    $region21: #{model_forward.1} parent=1 // pred_fallthru
      _
    // Predicated region
    $region22: #{model_forward.1} parent=1 // pred_check
      _
    $region23: #{model_forward.1} parent=1 // pred_check_branch
      %74 = sbr.rel (0) target = $region25
    $region24: #{model_forward.1} parent=1 // pred_region
      %75 = dma.done [#allocation3], 2048
    $region25: #{model_forward.1} parent=1 // pred_fallthru
      _
    // Predicated region
    $region26: #{model_forward.1} parent=1 // pred_check
      _
    $region27: #{model_forward.1} parent=1 // pred_check_branch
      %77 = sbr.rel (0) target = $region29
    $region28: #{model_forward.1} parent=1 // pred_region
      %78 = dma.done [#allocation5], 4096
    $region29: #{model_forward.1} parent=1 // pred_fallthru
      _
    // Predicated region
    $region30: #{model_forward.1} parent=1 // pred_check
      _
    $region31: #{model_forward.1} parent=1 // pred_check_branch
      %80 = sbr.rel (0) target = $region33
    $region32: #{model_forward.1} parent=1 // pred_region
      %81 = dma.done [#allocation5], 2048
    $region33: #{model_forward.1} parent=1 // pred_fallthru
      _
    // Predicated region
    $region34: #{model_forward.1} parent=1 // pred_check
      _
    $region35: #{model_forward.1} parent=1 // pred_check_branch
      %83 = sbr.rel (0) target = $region37
    $region36: #{model_forward.1} parent=1 // pred_region
      %84 = dma.done [#allocation8], 1024
    $region37: #{model_forward.1} parent=1 // pred_fallthru
      _
    // Predicated region
    $region38: #{model_forward.1} parent=1 // pred_check
      _
    $region39: #{model_forward.1} parent=1 // pred_check_branch
      %86 = sbr.rel (0) target = $region41
    $region40: #{model_forward.1} parent=1 // pred_region
      %87 = dma.done [#allocation8], 2048
    $region41: #{model_forward.1} parent=1 // pred_fallthru
      _
    %v89 = vld [vmem:[#allocation7] sm:$0xf]
    %v90 = vld [vmem:[#allocation7 + $0x4] sm:$0xf]
    %v91 = vld [vmem:[#allocation7 + $0x8] sm:$0xf]
    %v92 = vld [vmem:[#allocation7 + $0xc] sm:$0xf]
    %v93 = vld [vmem:[#allocation7 + $0x10] sm:$0xf]
    %v94 = vld [vmem:[#allocation7 + $0x14] sm:$0xf]
    %v95 = vld [vmem:[#allocation7 + $0x18] sm:$0xf]
    %v96 = vld [vmem:[#allocation7 + $0x1c] sm:$0xf]
    %v97 = vld [vmem:[#allocation7 + $0x20] sm:$0xf]
    %v98 = vld [vmem:[#allocation7 + $0x24] sm:$0xf]
    %v99 = vld [vmem:[#allocation7 + $0x28] sm:$0xf]
    %v100 = vld [vmem:[#allocation7 + $0x2c] sm:$0xf]
    %v101 = vld [vmem:[#allocation7 + $0x30] sm:$0xf]
    %v102 = vld [vmem:[#allocation7 + $0x34] sm:$0xf]
    %v103 = vld [vmem:[#allocation7 + $0x38] sm:$0xf]
    %v104 = vld [vmem:[#allocation7 + $0x3c] sm:$0xf]
    %v105 = vld [vmem:[#allocation9] sm:$0xff]
    %v106 = vld [vmem:[#allocation9 + $0x8] sm:$0xff]
    %v107 = vld [vmem:[#allocation9 + $0x10] sm:$0xff]
    %v108 = vld [vmem:[#allocation9 + $0x18] sm:$0xff]
    %v109 = vld [vmem:[#allocation9 + $0x20] sm:$0xff]
    %v110 = vld [vmem:[#allocation9 + $0x28] sm:$0xff]
    %v111 = vld [vmem:[#allocation9 + $0x30] sm:$0xff]
    %v112 = vld [vmem:[#allocation9 + $0x38] sm:$0xff]
    %v113 = vld [vmem:[#allocation9 + $0x40] sm:$0xff]
    %v114 = vld [vmem:[#allocation9 + $0x48] sm:$0xff]
    %v115 = vld [vmem:[#allocation9 + $0x50] sm:$0xff]
    %v116 = vld [vmem:[#allocation9 + $0x58] sm:$0xff]
    %v117 = vld [vmem:[#allocation9 + $0x60] sm:$0xff]
    %v118 = vld [vmem:[#allocation9 + $0x68] sm:$0xff]
    %v119 = vld [vmem:[#allocation9 + $0x70] sm:$0xff]
    %v120 = vld [vmem:[#allocation9 + $0x78] sm:$0xff]
    %v121 = vld [vmem:[#allocation2] sm:$0xff]
    %v122 = vld [vmem:[#allocation2 + $0x8] sm:$0xff]
    %v123 = vld [vmem:[#allocation2 + $0x10] sm:$0xff]
    %v124 = vld [vmem:[#allocation2 + $0x18] sm:$0xff]
    %v125 = vld [vmem:[#allocation2 + $0x20] sm:$0xff]
    %v126 = vld [vmem:[#allocation2 + $0x28] sm:$0xff]
    %v127 = vld [vmem:[#allocation2 + $0x30] sm:$0xff]
    %v128 = vld [vmem:[#allocation2 + $0x38] sm:$0xff]
    %v129 = vpack.c.bf16 %v122, %v121
    %v130 = vpack.c.bf16 %v124, %v123
    %v131 = vpack.c.bf16 %v126, %v125
    %v132 = vpack.c.bf16 %v128, %v127
    %v133 = vld [vmem:[#allocation4] sm:$0xff]
    %v134 = vld [vmem:[#allocation4 + $0x8] sm:$0xff]
    %v135 = vld [vmem:[#allocation4 + $0x10] sm:$0xff]
    %v136 = vld [vmem:[#allocation4 + $0x18] sm:$0xff]
    %v137 = vld [vmem:[#allocation4 + $0x20] sm:$0xff]
    %v138 = vld [vmem:[#allocation4 + $0x28] sm:$0xff]
    %v139 = vld [vmem:[#allocation4 + $0x30] sm:$0xff]
    %v140 = vld [vmem:[#allocation4 + $0x38] sm:$0xff]
    %v141 = vld [vmem:[#allocation4 + $0x40] sm:$0xff]
    %v142 = vld [vmem:[#allocation4 + $0x48] sm:$0xff]
    %v143 = vld [vmem:[#allocation4 + $0x50] sm:$0xff]
    %v144 = vld [vmem:[#allocation4 + $0x58] sm:$0xff]
    %v145 = vld [vmem:[#allocation4 + $0x60] sm:$0xff]
    %v146 = vld [vmem:[#allocation4 + $0x68] sm:$0xff]
    %v147 = vld [vmem:[#allocation4 + $0x70] sm:$0xff]
    %v148 = vld [vmem:[#allocation4 + $0x78] sm:$0xff]
    %v149 = vpack.c.bf16 %v134, %v133
    %v150 = vpack.c.bf16 %v136, %v135
    %v151 = vpack.c.bf16 %v138, %v137
    %v152 = vpack.c.bf16 %v140, %v139
    %v153 = vpack.c.bf16 %v142, %v141
    %v154 = vpack.c.bf16 %v144, %v143
    %v155 = vpack.c.bf16 %v146, %v145
    %v156 = vpack.c.bf16 %v148, %v147
    %v173 = vunpack.c.l.b16 %v89
    %v174 = vunpack.c.l.b16 %v90
    %v175 = vunpack.c.l.b16 %v91
    %v176 = vunpack.c.l.b16 %v92
    %v177 = vunpack.c.l.b16 %v93
    %v178 = vunpack.c.l.b16 %v94
    %v179 = vunpack.c.l.b16 %v95
    %v180 = vunpack.c.l.b16 %v96
    %v181 = vunpack.c.l.b16 %v97
    %v182 = vunpack.c.l.b16 %v98
    %v183 = vunpack.c.l.b16 %v99
    %v184 = vunpack.c.l.b16 %v100
    %v185 = vunpack.c.l.b16 %v101
    %v186 = vunpack.c.l.b16 %v102
    %v187 = vunpack.c.l.b16 %v103
    %v188 = vunpack.c.l.b16 %v104
    %v189 = vpack.c.b16 %v174, %v173
    %v190 = vpack.c.b16 %v176, %v175
    %v191 = vpack.c.b16 %v178, %v177
    %v192 = vpack.c.b16 %v180, %v179
    %v193 = vpack.c.b16 %v182, %v181
    %v194 = vpack.c.b16 %v184, %v183
    %v195 = vpack.c.b16 %v186, %v185
    %v196 = vpack.c.b16 %v188, %v187
    %205 = vmatprep.subr.bf16.mxu0 0
    %206 = vmatpush1.bf16.msra.mxu0 %v189
    %207 = vmatprep.subr.bf16.mxu0 0
    %208 = vmatpush1.bf16.msra.mxu0 %v190
    %209 = vmatprep.subr.bf16.mxu0 0
    %210 = vmatpush1.bf16.msra.mxu0 %v191
    %211 = vmatprep.subr.bf16.mxu0 0
    %212 = vmatpush1.bf16.msra.mxu0 %v192
    %213 = vmatprep.subr.bf16.mxu0 0
    %214 = vmatpush1.bf16.msra.mxu0 %v193
    %215 = vmatprep.subr.bf16.mxu0 0
    %216 = vmatpush1.bf16.msra.mxu0 %v194
    %217 = vmatprep.subr.bf16.mxu0 0
    %218 = vmatpush1.bf16.msra.mxu0 %v195
    %219 = vmatprep.subr.bf16.mxu0 0
    %220 = vmatpush1.bf16.msra.mxu0 %v196
    %221 = vmatprep.subr.bf16.mxu0 0
    %222 = vmatpush1.bf16.msra.mxu0 0
    %223 = vmatprep.subr.bf16.mxu0 0
    %224 = vmatpush1.bf16.msra.mxu0 0
    %225 = vmatprep.subr.bf16.mxu0 0
    %226 = vmatpush1.bf16.msra.mxu0 0
    %227 = vmatprep.subr.bf16.mxu0 0
    %228 = vmatpush1.bf16.msra.mxu0 0
    %229 = vmatprep.subr.bf16.mxu0 0
    %230 = vmatpush1.bf16.msra.mxu0 0
    %231 = vmatprep.subr.bf16.mxu0 0
    %232 = vmatpush1.bf16.msra.mxu0 0
    %233 = vmatprep.subr.bf16.mxu0 0
    %234 = vmatpush1.bf16.msra.mxu0 0
    %235 = vmatprep.subr.bf16.mxu0 0
    %236 = vmatpush1.bf16.msra.mxu0 0
    %237 = vmatprep.mubr.bf16.mxu0 0
    %238 = vmatmul.mubr.bf16.gmra.mrb[0].mxu0 %v129
    %v239 = vpop.f32.mrb[0].mxu0
    %v240 = vadd.f32 0.0, %v239
    %v241 = vpop.f32.mrb[0].mxu0
    %v242 = vpop.f32.mrb[0].mxu0
    %v243 = vadd.f32 0.0, %v242
    %v244 = vpop.f32.mrb[0].mxu0
    %245 = vmatprep.mubr.bf16.mxu0 0
    %246 = vmatmul.mubr.bf16.gmra.mrb[0].mxu0 %v130
    %v247 = vpop.f32.mrb[0].mxu0
    %v248 = vadd.f32 0.0, %v247
    %v249 = vpop.f32.mrb[0].mxu0
    %v250 = vpop.f32.mrb[0].mxu0
    %v251 = vadd.f32 0.0, %v250
    %v252 = vpop.f32.mrb[0].mxu0
    %253 = vmatprep.mubr.bf16.mxu0 0
    %254 = vmatmul.mubr.bf16.gmra.mrb[0].mxu0 %v131
    %v255 = vpop.f32.mrb[0].mxu0
    %v256 = vadd.f32 0.0, %v255
    %v257 = vpop.f32.mrb[0].mxu0
    %v258 = vpop.f32.mrb[0].mxu0
    %v259 = vadd.f32 0.0, %v258
    %v260 = vpop.f32.mrb[0].mxu0
    %261 = vmatprep.mubr.bf16.mxu0 0
    %262 = vmatmul.mubr.bf16.gmra.mrb[0].mxu0 %v132
    %v263 = vpop.f32.mrb[0].mxu0
    %v264 = vadd.f32 0.0, %v263
    %v265 = vpop.f32.mrb[0].mxu0
    %v266 = vpop.f32.mrb[0].mxu0
    %v267 = vadd.f32 0.0, %v266
    %v268 = vpop.f32.mrb[0].mxu0
    %269 = vdwg.mxu0
    %v270 = vpack.c.bf16 %v243, %v240
    %v271 = vpack.c.bf16 %v251, %v248
    %v272 = vpack.c.bf16 %v259, %v256
    %v273 = vpack.c.bf16 %v267, %v264
    %v290 = vunpack.c.l.b16 %v105
    %v291 = vunpack.c.h.b16 %v105
    %v292 = vunpack.c.l.b16 %v106
    %v293 = vunpack.c.h.b16 %v106
    %v294 = vunpack.c.l.b16 %v107
    %v295 = vunpack.c.h.b16 %v107
    %v296 = vunpack.c.l.b16 %v108
    %v297 = vunpack.c.h.b16 %v108
    %v298 = vunpack.c.l.b16 %v109
    %v299 = vunpack.c.h.b16 %v109
    %v300 = vunpack.c.l.b16 %v110
    %v301 = vunpack.c.h.b16 %v110
    %v302 = vunpack.c.l.b16 %v111
    %v303 = vunpack.c.h.b16 %v111
    %v304 = vunpack.c.l.b16 %v112
    %v305 = vunpack.c.h.b16 %v112
    %v306 = vunpack.c.l.b16 %v113
    %v307 = vunpack.c.h.b16 %v113
    %v308 = vunpack.c.l.b16 %v114
    %v309 = vunpack.c.h.b16 %v114
    %v310 = vunpack.c.l.b16 %v115
    %v311 = vunpack.c.h.b16 %v115
    %v312 = vunpack.c.l.b16 %v116
    %v313 = vunpack.c.h.b16 %v116
    %v314 = vunpack.c.l.b16 %v117
    %v315 = vunpack.c.h.b16 %v117
    %v316 = vunpack.c.l.b16 %v118
    %v317 = vunpack.c.h.b16 %v118
    %v318 = vunpack.c.l.b16 %v119
    %v319 = vunpack.c.h.b16 %v119
    %v320 = vunpack.c.l.b16 %v120
    %v321 = vunpack.c.h.b16 %v120
    %v322 = vpack.c.b16 %v292, %v290
    %v323 = vpack.c.b16 %v293, %v291
    %v324 = vpack.c.b16 %v296, %v294
    %v325 = vpack.c.b16 %v297, %v295
    %v326 = vpack.c.b16 %v300, %v298
    %v327 = vpack.c.b16 %v301, %v299
    %v328 = vpack.c.b16 %v304, %v302
    %v329 = vpack.c.b16 %v305, %v303
    %v330 = vpack.c.b16 %v308, %v306
    %v331 = vpack.c.b16 %v309, %v307
    %v332 = vpack.c.b16 %v312, %v310
    %v333 = vpack.c.b16 %v313, %v311
    %v334 = vpack.c.b16 %v316, %v314
    %v335 = vpack.c.b16 %v317, %v315
    %v336 = vpack.c.b16 %v320, %v318
    %v337 = vpack.c.b16 %v321, %v319
    %354 = vmatprep.subr.bf16.mxu0 %v323
    %355 = vmatpush1.bf16.msra.mxu0 %v322
    %356 = vmatprep.subr.bf16.mxu0 %v325
    %357 = vmatpush1.bf16.msra.mxu0 %v324
    %358 = vmatprep.subr.bf16.mxu0 %v327
    %359 = vmatpush1.bf16.msra.mxu0 %v326
    %360 = vmatprep.subr.bf16.mxu0 %v329
    %361 = vmatpush1.bf16.msra.mxu0 %v328
    %362 = vmatprep.subr.bf16.mxu0 %v331
    %363 = vmatpush1.bf16.msra.mxu0 %v330
    %364 = vmatprep.subr.bf16.mxu0 %v333
    %365 = vmatpush1.bf16.msra.mxu0 %v332
    %366 = vmatprep.subr.bf16.mxu0 %v335
    %367 = vmatpush1.bf16.msra.mxu0 %v334
    %368 = vmatprep.subr.bf16.mxu0 %v337
    %369 = vmatpush1.bf16.msra.mxu0 %v336
    %370 = vmatprep.subr.bf16.mxu0 0
    %371 = vmatpush1.bf16.msra.mxu0 0
    %372 = vmatprep.subr.bf16.mxu0 0
    %373 = vmatpush1.bf16.msra.mxu0 0
    %374 = vmatprep.subr.bf16.mxu0 0
    %375 = vmatpush1.bf16.msra.mxu0 0
    %376 = vmatprep.subr.bf16.mxu0 0
    %377 = vmatpush1.bf16.msra.mxu0 0
    %378 = vmatprep.subr.bf16.mxu0 0
    %379 = vmatpush1.bf16.msra.mxu0 0
    %380 = vmatprep.subr.bf16.mxu0 0
    %381 = vmatpush1.bf16.msra.mxu0 0
    %382 = vmatprep.subr.bf16.mxu0 0
    %383 = vmatpush1.bf16.msra.mxu0 0
    %384 = vmatprep.subr.bf16.mxu0 0
    %385 = vmatpush1.bf16.msra.mxu0 0
    %386 = vmatprep.mubr.bf16.mxu0 0
    %387 = vmatmul.mubr.bf16.gmra.mrb[0].mxu0 %v149
    %v388 = vpop.f32.mrb[0].mxu0
    %v389 = vadd.f32 0.0, %v388
    %v390 = vpop.f32.mrb[0].mxu0
    %v391 = vadd.f32 0.0, %v390
    %v392 = vpop.f32.mrb[0].mxu0
    %v393 = vadd.f32 0.0, %v392
    %v394 = vpop.f32.mrb[0].mxu0
    %v395 = vadd.f32 0.0, %v394
    %396 = vmatprep.mubr.bf16.mxu0 0
    %397 = vmatmul.mubr.bf16.gmra.mrb[0].mxu0 %v150
    %v398 = vpop.f32.mrb[0].mxu0
    %v399 = vadd.f32 0.0, %v398
    %v400 = vpop.f32.mrb[0].mxu0
    %v401 = vadd.f32 0.0, %v400
    %v402 = vpop.f32.mrb[0].mxu0
    %v403 = vadd.f32 0.0, %v402
    %v404 = vpop.f32.mrb[0].mxu0
    %v405 = vadd.f32 0.0, %v404
    %406 = vmatprep.mubr.bf16.mxu0 0
    %407 = vmatmul.mubr.bf16.gmra.mrb[0].mxu0 %v151
    %v408 = vpop.f32.mrb[0].mxu0
    %v409 = vadd.f32 0.0, %v408
    %v410 = vpop.f32.mrb[0].mxu0
    %v411 = vadd.f32 0.0, %v410
    %v412 = vpop.f32.mrb[0].mxu0
    %v413 = vadd.f32 0.0, %v412
    %v414 = vpop.f32.mrb[0].mxu0
    %v415 = vadd.f32 0.0, %v414
    %416 = vmatprep.mubr.bf16.mxu0 0
    %417 = vmatmul.mubr.bf16.gmra.mrb[0].mxu0 %v152
    %v418 = vpop.f32.mrb[0].mxu0
    %v419 = vadd.f32 0.0, %v418
    %v420 = vpop.f32.mrb[0].mxu0
    %v421 = vadd.f32 0.0, %v420
    %v422 = vpop.f32.mrb[0].mxu0
    %v423 = vadd.f32 0.0, %v422
    %v424 = vpop.f32.mrb[0].mxu0
    %v425 = vadd.f32 0.0, %v424
    %426 = vmatprep.mubr.bf16.mxu0 0
    %427 = vmatmul.mubr.bf16.gmra.mrb[0].mxu0 %v153
    %v428 = vpop.f32.mrb[0].mxu0
    %v429 = vadd.f32 0.0, %v428
    %v430 = vpop.f32.mrb[0].mxu0
    %v431 = vadd.f32 0.0, %v430
    %v432 = vpop.f32.mrb[0].mxu0
    %v433 = vadd.f32 0.0, %v432
    %v434 = vpop.f32.mrb[0].mxu0
    %v435 = vadd.f32 0.0, %v434
    %436 = vmatprep.mubr.bf16.mxu0 0
    %437 = vmatmul.mubr.bf16.gmra.mrb[0].mxu0 %v154
    %v438 = vpop.f32.mrb[0].mxu0
    %v439 = vadd.f32 0.0, %v438
    %v440 = vpop.f32.mrb[0].mxu0
    %v441 = vadd.f32 0.0, %v440
    %v442 = vpop.f32.mrb[0].mxu0
    %v443 = vadd.f32 0.0, %v442
    %v444 = vpop.f32.mrb[0].mxu0
    %v445 = vadd.f32 0.0, %v444
    %446 = vmatprep.mubr.bf16.mxu0 0
    %447 = vmatmul.mubr.bf16.gmra.mrb[0].mxu0 %v155
    %v448 = vpop.f32.mrb[0].mxu0
    %v449 = vadd.f32 0.0, %v448
    %v450 = vpop.f32.mrb[0].mxu0
    %v451 = vadd.f32 0.0, %v450
    %v452 = vpop.f32.mrb[0].mxu0
    %v453 = vadd.f32 0.0, %v452
    %v454 = vpop.f32.mrb[0].mxu0
    %v455 = vadd.f32 0.0, %v454
    %456 = vmatprep.mubr.bf16.mxu0 0
    %457 = vmatmul.mubr.bf16.gmra.mrb[0].mxu0 %v156
    %v458 = vpop.f32.mrb[0].mxu0
    %v459 = vadd.f32 0.0, %v458
    %v460 = vpop.f32.mrb[0].mxu0
    %v461 = vadd.f32 0.0, %v460
    %v462 = vpop.f32.mrb[0].mxu0
    %v463 = vadd.f32 0.0, %v462
    %v464 = vpop.f32.mrb[0].mxu0
    %v465 = vadd.f32 0.0, %v464
    %466 = vdwg.mxu0
    %v467 = vpack.c.bf16 %v393, %v389
    %v468 = vpack.c.bf16 %v395, %v391
    %v469 = vpack.c.bf16 %v403, %v399
    %v470 = vpack.c.bf16 %v405, %v401
    %v471 = vpack.c.bf16 %v413, %v409
    %v472 = vpack.c.bf16 %v415, %v411
    %v473 = vpack.c.bf16 %v423, %v419
    %v474 = vpack.c.bf16 %v425, %v421
    %v475 = vpack.c.bf16 %v433, %v429
    %v476 = vpack.c.bf16 %v435, %v431
    %v477 = vpack.c.bf16 %v443, %v439
    %v478 = vpack.c.bf16 %v445, %v441
    %v479 = vpack.c.bf16 %v453, %v449
    %v480 = vpack.c.bf16 %v455, %v451
    %v481 = vpack.c.bf16 %v463, %v459
    %v482 = vpack.c.bf16 %v465, %v461
    %483 = vmatprep.subr.bf16.mxu0 0
    %484 = vmatpush1.bf16.xpose.msra.mxu0 %v467
    %485 = vmatprep.subr.bf16.mxu0 0
    %486 = vmatpush1.bf16.xpose.msra.mxu0 %v469
    %487 = vmatprep.subr.bf16.mxu0 0
    %488 = vmatpush1.bf16.xpose.msra.mxu0 %v471
    %489 = vmatprep.subr.bf16.mxu0 0
    %490 = vmatpush1.bf16.xpose.msra.mxu0 %v473
    %491 = vmatprep.subr.bf16.mxu0 0
    %492 = vmatpush1.bf16.xpose.msra.mxu0 %v475
    %493 = vmatprep.subr.bf16.mxu0 0
    %494 = vmatpush1.bf16.xpose.msra.mxu0 %v477
    %495 = vmatprep.subr.bf16.mxu0 0
    %496 = vmatpush1.bf16.xpose.msra.mxu0 %v479
    %497 = vmatprep.subr.bf16.mxu0 0
    %498 = vmatpush1.bf16.xpose.msra.mxu0 %v481
    %499 = vmatprep.subr.bf16.mxu0 0
    %500 = vmatpush1.bf16.xpose.msra.mxu0 0
    %501 = vmatprep.subr.bf16.mxu0 0
    %502 = vmatpush1.bf16.xpose.msra.mxu0 0
    %503 = vmatprep.subr.bf16.mxu0 0
    %504 = vmatpush1.bf16.xpose.msra.mxu0 0
    %505 = vmatprep.subr.bf16.mxu0 0
    %506 = vmatpush1.bf16.xpose.msra.mxu0 0
    %507 = vmatprep.subr.bf16.mxu0 0
    %508 = vmatpush1.bf16.xpose.msra.mxu0 0
    %509 = vmatprep.subr.bf16.mxu0 0
    %510 = vmatpush1.bf16.xpose.msra.mxu0 0
    %511 = vmatprep.subr.bf16.mxu0 0
    %512 = vmatpush1.bf16.xpose.msra.mxu0 0
    %513 = vmatprep.subr.bf16.mxu0 0
    %514 = vmatpush1.bf16.xpose.msra.mxu0 0
    %515 = vmatprep.mubr.bf16.mxu0 0
    %516 = vmatmul.mubr.bf16.gmra.mrb[0].mxu0 %v270
    %v517 = vpop.f32.mrb[0].mxu0
    %v518 = vadd.f32 0.0, %v517
    %v519 = vpop.f32.mrb[0].mxu0
    %v520 = vpop.f32.mrb[0].mxu0
    %v521 = vadd.f32 0.0, %v520
    %v522 = vpop.f32.mrb[0].mxu0
    %523 = vmatprep.mubr.bf16.mxu0 0
    %524 = vmatmul.mubr.bf16.gmra.mrb[0].mxu0 %v271
    %v525 = vpop.f32.mrb[0].mxu0
    %v526 = vadd.f32 0.0, %v525
    %v527 = vpop.f32.mrb[0].mxu0
    %v528 = vpop.f32.mrb[0].mxu0
    %v529 = vadd.f32 0.0, %v528
    %v530 = vpop.f32.mrb[0].mxu0
    %531 = vmatprep.mubr.bf16.mxu0 0
    %532 = vmatmul.mubr.bf16.gmra.mrb[0].mxu0 %v272
    %v533 = vpop.f32.mrb[0].mxu0
    %v534 = vadd.f32 0.0, %v533
    %v535 = vpop.f32.mrb[0].mxu0
    %v536 = vpop.f32.mrb[0].mxu0
    %v537 = vadd.f32 0.0, %v536
    %v538 = vpop.f32.mrb[0].mxu0
    %539 = vmatprep.mubr.bf16.mxu0 0
    %540 = vmatmul.mubr.bf16.gmra.mrb[0].mxu0 %v273
    %v541 = vpop.f32.mrb[0].mxu0
    %v542 = vadd.f32 0.0, %v541
    %v543 = vpop.f32.mrb[0].mxu0
    %v544 = vpop.f32.mrb[0].mxu0
    %v545 = vadd.f32 0.0, %v544
    %v546 = vpop.f32.mrb[0].mxu0
    %547 = vdwg.mxu0
    %v548 = vld [vmem:[#allocation6] sm:$0xff]
    %v549 = vld [vmem:[#allocation6 + $0x8] sm:$0xff]
    %v550 = vld [vmem:[#allocation6 + $0x10] sm:$0xff]
    %v551 = vld [vmem:[#allocation6 + $0x18] sm:$0xff]
    %v552 = vld [vmem:[#allocation6 + $0x20] sm:$0xff]
    %v553 = vld [vmem:[#allocation6 + $0x28] sm:$0xff]
    %v554 = vld [vmem:[#allocation6 + $0x30] sm:$0xff]
    %v555 = vld [vmem:[#allocation6 + $0x38] sm:$0xff]
    %vm556 = vcmp.ne.s32.totalorder %v548, 0
    %vm557 = vcmp.ne.s32.totalorder %v549, 0
    %vm558 = vcmp.ne.s32.totalorder %v550, 0
    %vm559 = vcmp.ne.s32.totalorder %v551, 0
    %vm560 = vcmp.ne.s32.totalorder %v552, 0
    %vm561 = vcmp.ne.s32.totalorder %v553, 0
    %vm562 = vcmp.ne.s32.totalorder %v554, 0
    %vm563 = vcmp.ne.s32.totalorder %v555, 0
    %v564 = vsel %vm556, -1e+30, %v518
    %v565 = vsel %vm557, -1e+30, %v521
    %v566 = vsel %vm558, -1e+30, %v526
    %v567 = vsel %vm559, -1e+30, %v529
    %v568 = vsel %vm560, -1e+30, %v534
    %v569 = vsel %vm561, -1e+30, %v537
    %v570 = vsel %vm562, -1e+30, %v542
    %v571 = vsel %vm563, -1e+30, %v545
    %572 = vmax.xlane.f32.xlu0 %v564
    %v573 = vpop.xlane.xlu0 %572
    %574 = vmax.xlane.f32.xlu0 %v565
    %v575 = vpop.xlane.xlu0 %574
    %576 = vmax.xlane.f32.xlu0 %v566
    %v577 = vpop.xlane.xlu0 %576
    %578 = vmax.xlane.f32.xlu0 %v567
    %v579 = vpop.xlane.xlu0 %578
    %580 = vmax.xlane.f32.xlu0 %v568
    %v581 = vpop.xlane.xlu0 %580
    %582 = vmax.xlane.f32.xlu0 %v569
    %v583 = vpop.xlane.xlu0 %582
    %584 = vmax.xlane.f32.xlu0 %v570
    %v585 = vpop.xlane.xlu0 %584
    %586 = vmax.xlane.f32.xlu0 %v571
    %v587 = vpop.xlane.xlu0 %586
    %v588 = vsub.f32 %v564, %v573
    %v589 = vsub.f32 %v565, %v575
    %v590 = vsub.f32 %v566, %v577
    %v591 = vsub.f32 %v567, %v579
    %v592 = vsub.f32 %v568, %v581
    %v593 = vsub.f32 %v569, %v583
    %v594 = vsub.f32 %v570, %v585
    %v595 = vsub.f32 %v571, %v587
    %v596 = vmul.f32 %v588, 1.442695
    %v597 = vpow.pop %v596
    %v598 = vmul.f32 %v589, 1.442695
    %v599 = vpow.pop %v598
    %v600 = vmul.f32 %v590, 1.442695
    %v601 = vpow.pop %v600
    %v602 = vmul.f32 %v591, 1.442695
    %v603 = vpow.pop %v602
    %v604 = vmul.f32 %v592, 1.442695
    %v605 = vpow.pop %v604
    %v606 = vmul.f32 %v593, 1.442695
    %v607 = vpow.pop %v606
    %v608 = vmul.f32 %v594, 1.442695
    %v609 = vpow.pop %v608
    %v610 = vmul.f32 %v595, 1.442695
    %v611 = vpow.pop %v610
    %612 = vadd.xlane.f32.xlu0 %v597
    %v613 = vpop.xlane.xlu0 %612
    %614 = vadd.xlane.f32.xlu0 %v599
    %v615 = vpop.xlane.xlu0 %614
    %616 = vadd.xlane.f32.xlu0 %v601
    %v617 = vpop.xlane.xlu0 %616
    %618 = vadd.xlane.f32.xlu0 %v603
    %v619 = vpop.xlane.xlu0 %618
    %620 = vadd.xlane.f32.xlu0 %v605
    %v621 = vpop.xlane.xlu0 %620
    %622 = vadd.xlane.f32.xlu0 %v607
    %v623 = vpop.xlane.xlu0 %622
    %624 = vadd.xlane.f32.xlu0 %v609
    %v625 = vpop.xlane.xlu0 %624
    %626 = vadd.xlane.f32.xlu0 %v611
    %v627 = vpop.xlane.xlu0 %626
    %v628 = vrcp.pop %v613
    %v629 = vrcp.pop %v615
    %v630 = vrcp.pop %v617
    %v631 = vrcp.pop %v619
    %v632 = vrcp.pop %v621
    %v633 = vrcp.pop %v623
    %v634 = vrcp.pop %v625
    %v635 = vrcp.pop %v627
    %v636 = vmul.f32 %v597, %v628
    %v637 = vmul.f32 %v599, %v629
    %v638 = vmul.f32 %v601, %v630
    %v639 = vmul.f32 %v603, %v631
    %v640 = vmul.f32 %v605, %v632
    %v641 = vmul.f32 %v607, %v633
    %v642 = vmul.f32 %v609, %v634
    %v643 = vmul.f32 %v611, %v635
    %v644 = vpack.c.bf16 %v637, %v636
    %v645 = vpack.c.bf16 %v639, %v638
    %v646 = vpack.c.bf16 %v641, %v640
    %v647 = vpack.c.bf16 %v643, %v642
    %648 = vmatprep.subr.bf16.mxu0 0
    %649 = vmatpush1.bf16.xpose.msra.mxu0 %v644
    %650 = vmatprep.subr.bf16.mxu0 0
    %651 = vmatpush1.bf16.xpose.msra.mxu0 %v645
    %652 = vmatprep.subr.bf16.mxu0 0
    %653 = vmatpush1.bf16.xpose.msra.mxu0 %v646
    %654 = vmatprep.subr.bf16.mxu0 0
    %655 = vmatpush1.bf16.xpose.msra.mxu0 %v647
    %656 = vmatprep.subr.bf16.mxu0 0
    %657 = vmatpush1.bf16.xpose.msra.mxu0 0
    %658 = vmatprep.subr.bf16.mxu0 0
    %659 = vmatpush1.bf16.xpose.msra.mxu0 0
    %660 = vmatprep.subr.bf16.mxu0 0
    %661 = vmatpush1.bf16.xpose.msra.mxu0 0
    %662 = vmatprep.subr.bf16.mxu0 0
    %663 = vmatpush1.bf16.xpose.msra.mxu0 0
    %664 = vmatprep.subr.bf16.mxu0 0
    %665 = vmatpush1.bf16.xpose.msra.mxu0 0
    %666 = vmatprep.subr.bf16.mxu0 0
    %667 = vmatpush1.bf16.xpose.msra.mxu0 0
    %668 = vmatprep.subr.bf16.mxu0 0
    %669 = vmatpush1.bf16.xpose.msra.mxu0 0
    %670 = vmatprep.subr.bf16.mxu0 0
    %671 = vmatpush1.bf16.xpose.msra.mxu0 0
    %672 = vmatprep.subr.bf16.mxu0 0
    %673 = vmatpush1.bf16.xpose.msra.mxu0 0
    %674 = vmatprep.subr.bf16.mxu0 0
    %675 = vmatpush1.bf16.xpose.msra.mxu0 0
    %676 = vmatprep.subr.bf16.mxu0 0
    %677 = vmatpush1.bf16.xpose.msra.mxu0 0
    %678 = vmatprep.subr.bf16.mxu0 0
    %679 = vmatpush1.bf16.xpose.msra.mxu0 0
    %680 = vmatprep.mubr.bf16.mxu0 0
    %681 = vmatmul.mubr.bf16.gmra.mrb[0].mxu0 %v468
    %v682 = vpop.f32.mrb[0].mxu0
    %v683 = vadd.f32 0.0, %v682
    %v684 = vpop.f32.mrb[0].mxu0
    %v685 = vpop.f32.mrb[0].mxu0
    %v686 = vadd.f32 0.0, %v685
    %v687 = vpop.f32.mrb[0].mxu0
    %688 = vmatprep.mubr.bf16.mxu0 0
    %689 = vmatmul.mubr.bf16.gmra.mrb[0].mxu0 %v470
    %v690 = vpop.f32.mrb[0].mxu0
    %v691 = vadd.f32 0.0, %v690
    %v692 = vpop.f32.mrb[0].mxu0
    %v693 = vpop.f32.mrb[0].mxu0
    %v694 = vadd.f32 0.0, %v693
    %v695 = vpop.f32.mrb[0].mxu0
    %696 = vmatprep.mubr.bf16.mxu0 0
    %697 = vmatmul.mubr.bf16.gmra.mrb[0].mxu0 %v472
    %v698 = vpop.f32.mrb[0].mxu0
    %v699 = vadd.f32 0.0, %v698
    %v700 = vpop.f32.mrb[0].mxu0
    %v701 = vpop.f32.mrb[0].mxu0
    %v702 = vadd.f32 0.0, %v701
    %v703 = vpop.f32.mrb[0].mxu0
    %704 = vmatprep.mubr.bf16.mxu0 0
    %705 = vmatmul.mubr.bf16.gmra.mrb[0].mxu0 %v474
    %v706 = vpop.f32.mrb[0].mxu0
    %v707 = vadd.f32 0.0, %v706
    %v708 = vpop.f32.mrb[0].mxu0
    %v709 = vpop.f32.mrb[0].mxu0
    %v710 = vadd.f32 0.0, %v709
    %v711 = vpop.f32.mrb[0].mxu0
    %712 = vmatprep.mubr.bf16.mxu0 0
    %713 = vmatmul.mubr.bf16.gmra.mrb[0].mxu0 %v476
    %v714 = vpop.f32.mrb[0].mxu0
    %v715 = vadd.f32 0.0, %v714
    %v716 = vpop.f32.mrb[0].mxu0
    %v717 = vpop.f32.mrb[0].mxu0
    %v718 = vadd.f32 0.0, %v717
    %v719 = vpop.f32.mrb[0].mxu0
    %720 = vmatprep.mubr.bf16.mxu0 0
    %721 = vmatmul.mubr.bf16.gmra.mrb[0].mxu0 %v478
    %v722 = vpop.f32.mrb[0].mxu0
    %v723 = vadd.f32 0.0, %v722
    %v724 = vpop.f32.mrb[0].mxu0
    %v725 = vpop.f32.mrb[0].mxu0
    %v726 = vadd.f32 0.0, %v725
    %v727 = vpop.f32.mrb[0].mxu0
    %728 = vmatprep.mubr.bf16.mxu0 0
    %729 = vmatmul.mubr.bf16.gmra.mrb[0].mxu0 %v480
    %v730 = vpop.f32.mrb[0].mxu0
    %v731 = vadd.f32 0.0, %v730
    %v732 = vpop.f32.mrb[0].mxu0
    %v733 = vpop.f32.mrb[0].mxu0
    %v734 = vadd.f32 0.0, %v733
    %v735 = vpop.f32.mrb[0].mxu0
    %736 = vmatprep.mubr.bf16.mxu0 0
    %737 = vmatmul.mubr.bf16.gmra.mrb[0].mxu0 %v482
    %v738 = vpop.f32.mrb[0].mxu0
    %v739 = vadd.f32 0.0, %v738
    %v740 = vpop.f32.mrb[0].mxu0
    %v741 = vpop.f32.mrb[0].mxu0
    %v742 = vadd.f32 0.0, %v741
    %v743 = vpop.f32.mrb[0].mxu0
    %744 = vdwg.mxu0
    %v745 = vpack.c.bf16 %v686, %v683
    %v746 = vpack.c.bf16 %v694, %v691
    %v747 = vpack.c.bf16 %v702, %v699
    %v748 = vpack.c.bf16 %v710, %v707
    %v749 = vpack.c.bf16 %v718, %v715
    %v750 = vpack.c.bf16 %v726, %v723
    %v751 = vpack.c.bf16 %v734, %v731
    %v752 = vpack.c.bf16 %v742, %v739
    %v761 = vunpack.c.l.b16 %v745
    %v762 = vunpack.c.h.b16 %v745
    %v763 = vunpack.c.l.b16 %v746
    %v764 = vunpack.c.h.b16 %v746
    %v765 = vunpack.c.l.b16 %v747
    %v766 = vunpack.c.h.b16 %v747
    %v767 = vunpack.c.l.b16 %v748
    %v768 = vunpack.c.h.b16 %v748
    %v769 = vunpack.c.l.b16 %v749
    %v770 = vunpack.c.h.b16 %v749
    %v771 = vunpack.c.l.b16 %v750
    %v772 = vunpack.c.h.b16 %v750
    %v773 = vunpack.c.l.b16 %v751
    %v774 = vunpack.c.h.b16 %v751
    %v775 = vunpack.c.l.b16 %v752
    %v776 = vunpack.c.h.b16 %v752
    %v777 = vpack.c.b16 %v761, %v761
    %v778 = vpack.c.b16 %v762, %v762
    %v779 = vpack.c.b16 %v763, %v763
    %v780 = vpack.c.b16 %v764, %v764
    %v781 = vpack.c.b16 %v765, %v765
    %v782 = vpack.c.b16 %v766, %v766
    %v783 = vpack.c.b16 %v767, %v767
    %v784 = vpack.c.b16 %v768, %v768
    %v785 = vpack.c.b16 %v769, %v769
    %v786 = vpack.c.b16 %v770, %v770
    %v787 = vpack.c.b16 %v771, %v771
    %v788 = vpack.c.b16 %v772, %v772
    %v789 = vpack.c.b16 %v773, %v773
    %v790 = vpack.c.b16 %v774, %v774
    %v791 = vpack.c.b16 %v775, %v775
    %v792 = vpack.c.b16 %v776, %v776
    %vm809 = vcmask 519168
    %810 = vst.msk [vmem:[%s5] sm:$0xf] %vm809, %v777
    %811 = vst.msk [vmem:[%s5 + $0x4] sm:$0xf] %vm809, %v778
    %812 = vst.msk [vmem:[%s5 + $0x8] sm:$0xf] %vm809, %v779
    %813 = vst.msk [vmem:[%s5 + $0xc] sm:$0xf] %vm809, %v780
    %814 = vst.msk [vmem:[%s5 + $0x10] sm:$0xf] %vm809, %v781
    %815 = vst.msk [vmem:[%s5 + $0x14] sm:$0xf] %vm809, %v782
    %816 = vst.msk [vmem:[%s5 + $0x18] sm:$0xf] %vm809, %v783
    %817 = vst.msk [vmem:[%s5 + $0x1c] sm:$0xf] %vm809, %v784
    %818 = vst.msk [vmem:[%s5 + $0x20] sm:$0xf] %vm809, %v785
    %819 = vst.msk [vmem:[%s5 + $0x24] sm:$0xf] %vm809, %v786
    %820 = vst.msk [vmem:[%s5 + $0x28] sm:$0xf] %vm809, %v787
    %821 = vst.msk [vmem:[%s5 + $0x2c] sm:$0xf] %vm809, %v788
    %822 = vst.msk [vmem:[%s5 + $0x30] sm:$0xf] %vm809, %v789
    %823 = vst.msk [vmem:[%s5 + $0x34] sm:$0xf] %vm809, %v790
    %824 = vst.msk [vmem:[%s5 + $0x38] sm:$0xf] %vm809, %v791
    %825 = vst.msk [vmem:[%s5 + $0x3c] sm:$0xf] %vm809, %v792
    %s826 = scalar_lea.vmem [#allocation2], 64
    %v827 = vld [vmem:[%s826] sm:$0xff]
    %v828 = vld [vmem:[%s826 + $0x8] sm:$0xff]
    %v829 = vld [vmem:[%s826 + $0x10] sm:$0xff]
    %v830 = vld [vmem:[%s826 + $0x18] sm:$0xff]
    %v831 = vld [vmem:[%s826 + $0x20] sm:$0xff]
    %v832 = vld [vmem:[%s826 + $0x28] sm:$0xff]
    %v833 = vld [vmem:[%s826 + $0x30] sm:$0xff]
    %v834 = vld [vmem:[%s826 + $0x38] sm:$0xff]
    %v835 = vpack.c.bf16 %v828, %v827
    %v836 = vpack.c.bf16 %v830, %v829
    %v837 = vpack.c.bf16 %v832, %v831
    %v838 = vpack.c.bf16 %v834, %v833
    %s839 = scalar_lea.vmem [#allocation4], 128
    %v840 = vld [vmem:[%s839] sm:$0xff]
    %v841 = vld [vmem:[%s839 + $0x8] sm:$0xff]
    %v842 = vld [vmem:[%s839 + $0x10] sm:$0xff]
    %v843 = vld [vmem:[%s839 + $0x18] sm:$0xff]
    %v844 = vld [vmem:[%s839 + $0x20] sm:$0xff]
    %v845 = vld [vmem:[%s839 + $0x28] sm:$0xff]
    %v846 = vld [vmem:[%s839 + $0x30] sm:$0xff]
    %v847 = vld [vmem:[%s839 + $0x38] sm:$0xff]
    %v848 = vld [vmem:[%s839 + $0x40] sm:$0xff]
    %v849 = vld [vmem:[%s839 + $0x48] sm:$0xff]
    %v850 = vld [vmem:[%s839 + $0x50] sm:$0xff]
    %v851 = vld [vmem:[%s839 + $0x58] sm:$0xff]
    %v852 = vld [vmem:[%s839 + $0x60] sm:$0xff]
    %v853 = vld [vmem:[%s839 + $0x68] sm:$0xff]
    %v854 = vld [vmem:[%s839 + $0x70] sm:$0xff]
    %v855 = vld [vmem:[%s839 + $0x78] sm:$0xff]
    %v856 = vpack.c.bf16 %v841, %v840
    %v857 = vpack.c.bf16 %v843, %v842
    %v858 = vpack.c.bf16 %v845, %v844
    %v859 = vpack.c.bf16 %v847, %v846
    %v860 = vpack.c.bf16 %v849, %v848
    %v861 = vpack.c.bf16 %v851, %v850
    %v862 = vpack.c.bf16 %v853, %v852
    %v863 = vpack.c.bf16 %v855, %v854
    %864 = vmatprep.subr.bf16.mxu0 0
    %865 = vmatpush1.bf16.msra.mxu0 %v189
    %866 = vmatprep.subr.bf16.mxu0 0
    %867 = vmatpush1.bf16.msra.mxu0 %v190
    %868 = vmatprep.subr.bf16.mxu0 0
    %869 = vmatpush1.bf16.msra.mxu0 %v191
    %870 = vmatprep.subr.bf16.mxu0 0
    %871 = vmatpush1.bf16.msra.mxu0 %v192
    %872 = vmatprep.subr.bf16.mxu0 0
    %873 = vmatpush1.bf16.msra.mxu0 %v193
    %874 = vmatprep.subr.bf16.mxu0 0
    %875 = vmatpush1.bf16.msra.mxu0 %v194
    %876 = vmatprep.subr.bf16.mxu0 0
    %877 = vmatpush1.bf16.msra.mxu0 %v195
    %878 = vmatprep.subr.bf16.mxu0 0
    %879 = vmatpush1.bf16.msra.mxu0 %v196
    %880 = vmatprep.subr.bf16.mxu0 0
    %881 = vmatpush1.bf16.msra.mxu0 0
    %882 = vmatprep.subr.bf16.mxu0 0
    %883 = vmatpush1.bf16.msra.mxu0 0
    %884 = vmatprep.subr.bf16.mxu0 0
    %885 = vmatpush1.bf16.msra.mxu0 0
    %886 = vmatprep.subr.bf16.mxu0 0
    %887 = vmatpush1.bf16.msra.mxu0 0
    %888 = vmatprep.subr.bf16.mxu0 0
    %889 = vmatpush1.bf16.msra.mxu0 0
    %890 = vmatprep.subr.bf16.mxu0 0
    %891 = vmatpush1.bf16.msra.mxu0 0
    %892 = vmatprep.subr.bf16.mxu0 0
    %893 = vmatpush1.bf16.msra.mxu0 0
    %894 = vmatprep.subr.bf16.mxu0 0
    %895 = vmatpush1.bf16.msra.mxu0 0
    %896 = vmatprep.mubr.bf16.mxu0 0
    %897 = vmatmul.mubr.bf16.gmra.mrb[0].mxu0 %v835
    %v898 = vpop.f32.mrb[0].mxu0
    %v899 = vadd.f32 0.0, %v898
    %v900 = vpop.f32.mrb[0].mxu0
    %v901 = vpop.f32.mrb[0].mxu0
    %v902 = vadd.f32 0.0, %v901
    %v903 = vpop.f32.mrb[0].mxu0
    %904 = vmatprep.mubr.bf16.mxu0 0
    %905 = vmatmul.mubr.bf16.gmra.mrb[0].mxu0 %v836
    %v906 = vpop.f32.mrb[0].mxu0
    %v907 = vadd.f32 0.0, %v906
    %v908 = vpop.f32.mrb[0].mxu0
    %v909 = vpop.f32.mrb[0].mxu0
    %v910 = vadd.f32 0.0, %v909
    %v911 = vpop.f32.mrb[0].mxu0
    %912 = vmatprep.mubr.bf16.mxu0 0
    %913 = vmatmul.mubr.bf16.gmra.mrb[0].mxu0 %v837
    %v914 = vpop.f32.mrb[0].mxu0
    %v915 = vadd.f32 0.0, %v914
    %v916 = vpop.f32.mrb[0].mxu0
    %v917 = vpop.f32.mrb[0].mxu0
    %v918 = vadd.f32 0.0, %v917
    %v919 = vpop.f32.mrb[0].mxu0
    %920 = vmatprep.mubr.bf16.mxu0 0
    %921 = vmatmul.mubr.bf16.gmra.mrb[0].mxu0 %v838
    %v922 = vpop.f32.mrb[0].mxu0
    %v923 = vadd.f32 0.0, %v922
    %v924 = vpop.f32.mrb[0].mxu0
    %v925 = vpop.f32.mrb[0].mxu0
    %v926 = vadd.f32 0.0, %v925
    %v927 = vpop.f32.mrb[0].mxu0
    %928 = vdwg.mxu0
    %v929 = vpack.c.bf16 %v902, %v899
    %v930 = vpack.c.bf16 %v910, %v907
    %v931 = vpack.c.bf16 %v918, %v915
    %v932 = vpack.c.bf16 %v926, %v923
    %933 = vmatprep.subr.bf16.mxu0 %v323
    %934 = vmatpush1.bf16.msra.mxu0 %v322
    %935 = vmatprep.subr.bf16.mxu0 %v325
    %936 = vmatpush1.bf16.msra.mxu0 %v324
    %937 = vmatprep.subr.bf16.mxu0 %v327
    %938 = vmatpush1.bf16.msra.mxu0 %v326
    %939 = vmatprep.subr.bf16.mxu0 %v329
    %940 = vmatpush1.bf16.msra.mxu0 %v328
    %941 = vmatprep.subr.bf16.mxu0 %v331
    %942 = vmatpush1.bf16.msra.mxu0 %v330
    %943 = vmatprep.subr.bf16.mxu0 %v333
    %944 = vmatpush1.bf16.msra.mxu0 %v332
    %945 = vmatprep.subr.bf16.mxu0 %v335
    %946 = vmatpush1.bf16.msra.mxu0 %v334
    %947 = vmatprep.subr.bf16.mxu0 %v337
    %948 = vmatpush1.bf16.msra.mxu0 %v336
    %949 = vmatprep.subr.bf16.mxu0 0
    %950 = vmatpush1.bf16.msra.mxu0 0
    %951 = vmatprep.subr.bf16.mxu0 0
    %952 = vmatpush1.bf16.msra.mxu0 0
    %953 = vmatprep.subr.bf16.mxu0 0
    %954 = vmatpush1.bf16.msra.mxu0 0
    %955 = vmatprep.subr.bf16.mxu0 0
    %956 = vmatpush1.bf16.msra.mxu0 0
    %957 = vmatprep.subr.bf16.mxu0 0
    %958 = vmatpush1.bf16.msra.mxu0 0
    %959 = vmatprep.subr.bf16.mxu0 0
    %960 = vmatpush1.bf16.msra.mxu0 0
    %961 = vmatprep.subr.bf16.mxu0 0
    %962 = vmatpush1.bf16.msra.mxu0 0
    %963 = vmatprep.subr.bf16.mxu0 0
    %964 = vmatpush1.bf16.msra.mxu0 0
    %965 = vmatprep.mubr.bf16.mxu0 0
    %966 = vmatmul.mubr.bf16.gmra.mrb[0].mxu0 %v856
    %v967 = vpop.f32.mrb[0].mxu0
    %v968 = vadd.f32 0.0, %v967
    %v969 = vpop.f32.mrb[0].mxu0
    %v970 = vadd.f32 0.0, %v969
    %v971 = vpop.f32.mrb[0].mxu0
    %v972 = vadd.f32 0.0, %v971
    %v973 = vpop.f32.mrb[0].mxu0
    %v974 = vadd.f32 0.0, %v973
    %975 = vmatprep.mubr.bf16.mxu0 0
    %976 = vmatmul.mubr.bf16.gmra.mrb[0].mxu0 %v857
    %v977 = vpop.f32.mrb[0].mxu0
    %v978 = vadd.f32 0.0, %v977
    %v979 = vpop.f32.mrb[0].mxu0
    %v980 = vadd.f32 0.0, %v979
    %v981 = vpop.f32.mrb[0].mxu0
    %v982 = vadd.f32 0.0, %v981
    %v983 = vpop.f32.mrb[0].mxu0
    %v984 = vadd.f32 0.0, %v983
    %985 = vmatprep.mubr.bf16.mxu0 0
    %986 = vmatmul.mubr.bf16.gmra.mrb[0].mxu0 %v858
    %v987 = vpop.f32.mrb[0].mxu0
    %v988 = vadd.f32 0.0, %v987
    %v989 = vpop.f32.mrb[0].mxu0
    %v990 = vadd.f32 0.0, %v989
    %v991 = vpop.f32.mrb[0].mxu0
    %v992 = vadd.f32 0.0, %v991
    %v993 = vpop.f32.mrb[0].mxu0
    %v994 = vadd.f32 0.0, %v993
    %995 = vmatprep.mubr.bf16.mxu0 0
    %996 = vmatmul.mubr.bf16.gmra.mrb[0].mxu0 %v859
    %v997 = vpop.f32.mrb[0].mxu0
    %v998 = vadd.f32 0.0, %v997
    %v999 = vpop.f32.mrb[0].mxu0
    %v1000 = vadd.f32 0.0, %v999
    %v1001 = vpop.f32.mrb[0].mxu0
    %v1002 = vadd.f32 0.0, %v1001
    %v1003 = vpop.f32.mrb[0].mxu0
    %v1004 = vadd.f32 0.0, %v1003
    %1005 = vmatprep.mubr.bf16.mxu0 0
    %1006 = vmatmul.mubr.bf16.gmra.mrb[0].mxu0 %v860
    %v1007 = vpop.f32.mrb[0].mxu0
    %v1008 = vadd.f32 0.0, %v1007
    %v1009 = vpop.f32.mrb[0].mxu0
    %v1010 = vadd.f32 0.0, %v1009
    %v1011 = vpop.f32.mrb[0].mxu0
    %v1012 = vadd.f32 0.0, %v1011
    %v1013 = vpop.f32.mrb[0].mxu0
    %v1014 = vadd.f32 0.0, %v1013
    %1015 = vmatprep.mubr.bf16.mxu0 0
    %1016 = vmatmul.mubr.bf16.gmra.mrb[0].mxu0 %v861
    %v1017 = vpop.f32.mrb[0].mxu0
    %v1018 = vadd.f32 0.0, %v1017
    %v1019 = vpop.f32.mrb[0].mxu0
    %v1020 = vadd.f32 0.0, %v1019
    %v1021 = vpop.f32.mrb[0].mxu0
    %v1022 = vadd.f32 0.0, %v1021
    %v1023 = vpop.f32.mrb[0].mxu0
    %v1024 = vadd.f32 0.0, %v1023
    %1025 = vmatprep.mubr.bf16.mxu0 0
    %1026 = vmatmul.mubr.bf16.gmra.mrb[0].mxu0 %v862
    %v1027 = vpop.f32.mrb[0].mxu0
    %v1028 = vadd.f32 0.0, %v1027
    %v1029 = vpop.f32.mrb[0].mxu0
    %v1030 = vadd.f32 0.0, %v1029
    %v1031 = vpop.f32.mrb[0].mxu0
    %v1032 = vadd.f32 0.0, %v1031
    %v1033 = vpop.f32.mrb[0].mxu0
    %v1034 = vadd.f32 0.0, %v1033
    %1035 = vmatprep.mubr.bf16.mxu0 0
    %1036 = vmatmul.mubr.bf16.gmra.mrb[0].mxu0 %v863
    %v1037 = vpop.f32.mrb[0].mxu0
    %v1038 = vadd.f32 0.0, %v1037
    %v1039 = vpop.f32.mrb[0].mxu0
    %v1040 = vadd.f32 0.0, %v1039
    %v1041 = vpop.f32.mrb[0].mxu0
    %v1042 = vadd.f32 0.0, %v1041
    %v1043 = vpop.f32.mrb[0].mxu0
    %v1044 = vadd.f32 0.0, %v1043
    %1045 = vdwg.mxu0
    %v1046 = vpack.c.bf16 %v972, %v968
    %v1047 = vpack.c.bf16 %v974, %v970
    %v1048 = vpack.c.bf16 %v982, %v978
    %v1049 = vpack.c.bf16 %v984, %v980
    %v1050 = vpack.c.bf16 %v992, %v988
    %v1051 = vpack.c.bf16 %v994, %v990
    %v1052 = vpack.c.bf16 %v1002, %v998
    %v1053 = vpack.c.bf16 %v1004, %v1000
    %v1054 = vpack.c.bf16 %v1012, %v1008
    %v1055 = vpack.c.bf16 %v1014, %v1010
    %v1056 = vpack.c.bf16 %v1022, %v1018
    %v1057 = vpack.c.bf16 %v1024, %v1020
    %v1058 = vpack.c.bf16 %v1032, %v1028
    %v1059 = vpack.c.bf16 %v1034, %v1030
    %v1060 = vpack.c.bf16 %v1042, %v1038
    %v1061 = vpack.c.bf16 %v1044, %v1040
    %1062 = vmatprep.subr.bf16.mxu0 0
    %1063 = vmatpush1.bf16.xpose.msra.mxu0 %v1046
    %1064 = vmatprep.subr.bf16.mxu0 0
    %1065 = vmatpush1.bf16.xpose.msra.mxu0 %v1048
    %1066 = vmatprep.subr.bf16.mxu0 0
    %1067 = vmatpush1.bf16.xpose.msra.mxu0 %v1050
    %1068 = vmatprep.subr.bf16.mxu0 0
    %1069 = vmatpush1.bf16.xpose.msra.mxu0 %v1052
    %1070 = vmatprep.subr.bf16.mxu0 0
    %1071 = vmatpush1.bf16.xpose.msra.mxu0 %v1054
    %1072 = vmatprep.subr.bf16.mxu0 0
    %1073 = vmatpush1.bf16.xpose.msra.mxu0 %v1056
    %1074 = vmatprep.subr.bf16.mxu0 0
    %1075 = vmatpush1.bf16.xpose.msra.mxu0 %v1058
    %1076 = vmatprep.subr.bf16.mxu0 0
    %1077 = vmatpush1.bf16.xpose.msra.mxu0 %v1060
    %1078 = vmatprep.subr.bf16.mxu0 0
    %1079 = vmatpush1.bf16.xpose.msra.mxu0 0
    %1080 = vmatprep.subr.bf16.mxu0 0
    %1081 = vmatpush1.bf16.xpose.msra.mxu0 0
    %1082 = vmatprep.subr.bf16.mxu0 0
    %1083 = vmatpush1.bf16.xpose.msra.mxu0 0
    %1084 = vmatprep.subr.bf16.mxu0 0
    %1085 = vmatpush1.bf16.xpose.msra.mxu0 0
    %1086 = vmatprep.subr.bf16.mxu0 0
    %1087 = vmatpush1.bf16.xpose.msra.mxu0 0
    %1088 = vmatprep.subr.bf16.mxu0 0
    %1089 = vmatpush1.bf16.xpose.msra.mxu0 0
    %1090 = vmatprep.subr.bf16.mxu0 0
    %1091 = vmatpush1.bf16.xpose.msra.mxu0 0
    %1092 = vmatprep.subr.bf16.mxu0 0
    %1093 = vmatpush1.bf16.xpose.msra.mxu0 0
    %1094 = vmatprep.mubr.bf16.mxu0 0
    %1095 = vmatmul.mubr.bf16.gmra.mrb[0].mxu0 %v929
    %v1096 = vpop.f32.mrb[0].mxu0
    %v1097 = vadd.f32 0.0, %v1096
    %v1098 = vpop.f32.mrb[0].mxu0
    %v1099 = vpop.f32.mrb[0].mxu0
    %v1100 = vadd.f32 0.0, %v1099
    %v1101 = vpop.f32.mrb[0].mxu0
    %1102 = vmatprep.mubr.bf16.mxu0 0
    %1103 = vmatmul.mubr.bf16.gmra.mrb[0].mxu0 %v930
    %v1104 = vpop.f32.mrb[0].mxu0
    %v1105 = vadd.f32 0.0, %v1104
    %v1106 = vpop.f32.mrb[0].mxu0
    %v1107 = vpop.f32.mrb[0].mxu0
    %v1108 = vadd.f32 0.0, %v1107
    %v1109 = vpop.f32.mrb[0].mxu0
    %1110 = vmatprep.mubr.bf16.mxu0 0
    %1111 = vmatmul.mubr.bf16.gmra.mrb[0].mxu0 %v931
    %v1112 = vpop.f32.mrb[0].mxu0
    %v1113 = vadd.f32 0.0, %v1112
    %v1114 = vpop.f32.mrb[0].mxu0
    %v1115 = vpop.f32.mrb[0].mxu0
    %v1116 = vadd.f32 0.0, %v1115
    %v1117 = vpop.f32.mrb[0].mxu0
    %1118 = vmatprep.mubr.bf16.mxu0 0
    %1119 = vmatmul.mubr.bf16.gmra.mrb[0].mxu0 %v932
    %v1120 = vpop.f32.mrb[0].mxu0
    %v1121 = vadd.f32 0.0, %v1120
    %v1122 = vpop.f32.mrb[0].mxu0
    %v1123 = vpop.f32.mrb[0].mxu0
    %v1124 = vadd.f32 0.0, %v1123
    %v1125 = vpop.f32.mrb[0].mxu0
    %1126 = vdwg.mxu0
    %s1127 = scalar_lea.vmem [#allocation6], 64
    %v1128 = vld [vmem:[%s1127] sm:$0xff]
    %v1129 = vld [vmem:[%s1127 + $0x8] sm:$0xff]
    %v1130 = vld [vmem:[%s1127 + $0x10] sm:$0xff]
    %v1131 = vld [vmem:[%s1127 + $0x18] sm:$0xff]
    %v1132 = vld [vmem:[%s1127 + $0x20] sm:$0xff]
    %v1133 = vld [vmem:[%s1127 + $0x28] sm:$0xff]
    %v1134 = vld [vmem:[%s1127 + $0x30] sm:$0xff]
    %v1135 = vld [vmem:[%s1127 + $0x38] sm:$0xff]
    %vm1136 = vcmp.ne.s32.totalorder %v1128, 0
    %vm1137 = vcmp.ne.s32.totalorder %v1129, 0
    %vm1138 = vcmp.ne.s32.totalorder %v1130, 0
    %vm1139 = vcmp.ne.s32.totalorder %v1131, 0
    %vm1140 = vcmp.ne.s32.totalorder %v1132, 0
    %vm1141 = vcmp.ne.s32.totalorder %v1133, 0
    %vm1142 = vcmp.ne.s32.totalorder %v1134, 0
    %vm1143 = vcmp.ne.s32.totalorder %v1135, 0
    %v1144 = vsel %vm1136, -1e+30, %v1097
    %v1145 = vsel %vm1137, -1e+30, %v1100
    %v1146 = vsel %vm1138, -1e+30, %v1105
    %v1147 = vsel %vm1139, -1e+30, %v1108
    %v1148 = vsel %vm1140, -1e+30, %v1113
    %v1149 = vsel %vm1141, -1e+30, %v1116
    %v1150 = vsel %vm1142, -1e+30, %v1121
    %v1151 = vsel %vm1143, -1e+30, %v1124
    %1152 = vmax.xlane.f32.xlu0 %v1144
    %v1153 = vpop.xlane.xlu0 %1152
    %1154 = vmax.xlane.f32.xlu0 %v1145
    %v1155 = vpop.xlane.xlu0 %1154
    %1156 = vmax.xlane.f32.xlu0 %v1146
    %v1157 = vpop.xlane.xlu0 %1156
    %1158 = vmax.xlane.f32.xlu0 %v1147
    %v1159 = vpop.xlane.xlu0 %1158
    %1160 = vmax.xlane.f32.xlu0 %v1148
    %v1161 = vpop.xlane.xlu0 %1160
    %1162 = vmax.xlane.f32.xlu0 %v1149
    %v1163 = vpop.xlane.xlu0 %1162
    %1164 = vmax.xlane.f32.xlu0 %v1150
    %v1165 = vpop.xlane.xlu0 %1164
    %1166 = vmax.xlane.f32.xlu0 %v1151
    %v1167 = vpop.xlane.xlu0 %1166
    %v1168 = vsub.f32 %v1144, %v1153
    %v1169 = vsub.f32 %v1145, %v1155
    %v1170 = vsub.f32 %v1146, %v1157
    %v1171 = vsub.f32 %v1147, %v1159
    %v1172 = vsub.f32 %v1148, %v1161
    %v1173 = vsub.f32 %v1149, %v1163
    %v1174 = vsub.f32 %v1150, %v1165
    %v1175 = vsub.f32 %v1151, %v1167
    %v1176 = vmul.f32 %v1168, 1.442695
    %v1177 = vpow.pop %v1176
    %v1178 = vmul.f32 %v1169, 1.442695
    %v1179 = vpow.pop %v1178
    %v1180 = vmul.f32 %v1170, 1.442695
    %v1181 = vpow.pop %v1180
    %v1182 = vmul.f32 %v1171, 1.442695
    %v1183 = vpow.pop %v1182
    %v1184 = vmul.f32 %v1172, 1.442695
    %v1185 = vpow.pop %v1184
    %v1186 = vmul.f32 %v1173, 1.442695
    %v1187 = vpow.pop %v1186
    %v1188 = vmul.f32 %v1174, 1.442695
    %v1189 = vpow.pop %v1188
    %v1190 = vmul.f32 %v1175, 1.442695
    %v1191 = vpow.pop %v1190
    %1192 = vadd.xlane.f32.xlu0 %v1177
    %v1193 = vpop.xlane.xlu0 %1192
    %1194 = vadd.xlane.f32.xlu0 %v1179
    %v1195 = vpop.xlane.xlu0 %1194
    %1196 = vadd.xlane.f32.xlu0 %v1181
    %v1197 = vpop.xlane.xlu0 %1196
    %1198 = vadd.xlane.f32.xlu0 %v1183
    %v1199 = vpop.xlane.xlu0 %1198
    %1200 = vadd.xlane.f32.xlu0 %v1185
    %v1201 = vpop.xlane.xlu0 %1200
    %1202 = vadd.xlane.f32.xlu0 %v1187
    %v1203 = vpop.xlane.xlu0 %1202
    %1204 = vadd.xlane.f32.xlu0 %v1189
    %v1205 = vpop.xlane.xlu0 %1204
    %1206 = vadd.xlane.f32.xlu0 %v1191
    %v1207 = vpop.xlane.xlu0 %1206
    %v1208 = vrcp.pop %v1193
    %v1209 = vrcp.pop %v1195
    %v1210 = vrcp.pop %v1197
    %v1211 = vrcp.pop %v1199
    %v1212 = vrcp.pop %v1201
    %v1213 = vrcp.pop %v1203
    %v1214 = vrcp.pop %v1205
    %v1215 = vrcp.pop %v1207
    %v1216 = vmul.f32 %v1177, %v1208
    %v1217 = vmul.f32 %v1179, %v1209
    %v1218 = vmul.f32 %v1181, %v1210
    %v1219 = vmul.f32 %v1183, %v1211
    %v1220 = vmul.f32 %v1185, %v1212
    %v1221 = vmul.f32 %v1187, %v1213
    %v1222 = vmul.f32 %v1189, %v1214
    %v1223 = vmul.f32 %v1191, %v1215
    %v1224 = vpack.c.bf16 %v1217, %v1216
    %v1225 = vpack.c.bf16 %v1219, %v1218
    %v1226 = vpack.c.bf16 %v1221, %v1220
    %v1227 = vpack.c.bf16 %v1223, %v1222
    %1228 = vmatprep.subr.bf16.mxu0 0
    %1229 = vmatpush1.bf16.xpose.msra.mxu0 %v1224
    %1230 = vmatprep.subr.bf16.mxu0 0
    %1231 = vmatpush1.bf16.xpose.msra.mxu0 %v1225
    %1232 = vmatprep.subr.bf16.mxu0 0
    %1233 = vmatpush1.bf16.xpose.msra.mxu0 %v1226
    %1234 = vmatprep.subr.bf16.mxu0 0
    %1235 = vmatpush1.bf16.xpose.msra.mxu0 %v1227
    %1236 = vmatprep.subr.bf16.mxu0 0
    %1237 = vmatpush1.bf16.xpose.msra.mxu0 0
    %1238 = vmatprep.subr.bf16.mxu0 0
    %1239 = vmatpush1.bf16.xpose.msra.mxu0 0
    %1240 = vmatprep.subr.bf16.mxu0 0
    %1241 = vmatpush1.bf16.xpose.msra.mxu0 0
    %1242 = vmatprep.subr.bf16.mxu0 0
    %1243 = vmatpush1.bf16.xpose.msra.mxu0 0
    %1244 = vmatprep.subr.bf16.mxu0 0
    %1245 = vmatpush1.bf16.xpose.msra.mxu0 0
    %1246 = vmatprep.subr.bf16.mxu0 0
    %1247 = vmatpush1.bf16.xpose.msra.mxu0 0
    %1248 = vmatprep.subr.bf16.mxu0 0
    %1249 = vmatpush1.bf16.xpose.msra.mxu0 0
    %1250 = vmatprep.subr.bf16.mxu0 0
    %1251 = vmatpush1.bf16.xpose.msra.mxu0 0
    %1252 = vmatprep.subr.bf16.mxu0 0
    %1253 = vmatpush1.bf16.xpose.msra.mxu0 0
    %1254 = vmatprep.subr.bf16.mxu0 0
    %1255 = vmatpush1.bf16.xpose.msra.mxu0 0
    %1256 = vmatprep.subr.bf16.mxu0 0
    %1257 = vmatpush1.bf16.xpose.msra.mxu0 0
    %1258 = vmatprep.subr.bf16.mxu0 0
    %1259 = vmatpush1.bf16.xpose.msra.mxu0 0
    %1260 = vmatprep.mubr.bf16.mxu0 0
    %1261 = vmatmul.mubr.bf16.gmra.mrb[0].mxu0 %v1047
    %v1262 = vpop.f32.mrb[0].mxu0
    %v1263 = vadd.f32 0.0, %v1262
    %v1264 = vpop.f32.mrb[0].mxu0
    %v1265 = vpop.f32.mrb[0].mxu0
    %v1266 = vadd.f32 0.0, %v1265
    %v1267 = vpop.f32.mrb[0].mxu0
    %1268 = vmatprep.mubr.bf16.mxu0 0
    %1269 = vmatmul.mubr.bf16.gmra.mrb[0].mxu0 %v1049
    %v1270 = vpop.f32.mrb[0].mxu0
    %v1271 = vadd.f32 0.0, %v1270
    %v1272 = vpop.f32.mrb[0].mxu0
    %v1273 = vpop.f32.mrb[0].mxu0
    %v1274 = vadd.f32 0.0, %v1273
    %v1275 = vpop.f32.mrb[0].mxu0
    %1276 = vmatprep.mubr.bf16.mxu0 0
    %1277 = vmatmul.mubr.bf16.gmra.mrb[0].mxu0 %v1051
    %v1278 = vpop.f32.mrb[0].mxu0
    %v1279 = vadd.f32 0.0, %v1278
    %v1280 = vpop.f32.mrb[0].mxu0
    %v1281 = vpop.f32.mrb[0].mxu0
    %v1282 = vadd.f32 0.0, %v1281
    %v1283 = vpop.f32.mrb[0].mxu0
    %1284 = vmatprep.mubr.bf16.mxu0 0
    %1285 = vmatmul.mubr.bf16.gmra.mrb[0].mxu0 %v1053
    %v1286 = vpop.f32.mrb[0].mxu0
    %v1287 = vadd.f32 0.0, %v1286
    %v1288 = vpop.f32.mrb[0].mxu0
    %v1289 = vpop.f32.mrb[0].mxu0
    %v1290 = vadd.f32 0.0, %v1289
    %v1291 = vpop.f32.mrb[0].mxu0
    %1292 = vmatprep.mubr.bf16.mxu0 0
    %1293 = vmatmul.mubr.bf16.gmra.mrb[0].mxu0 %v1055
    %v1294 = vpop.f32.mrb[0].mxu0
    %v1295 = vadd.f32 0.0, %v1294
    %v1296 = vpop.f32.mrb[0].mxu0
    %v1297 = vpop.f32.mrb[0].mxu0
    %v1298 = vadd.f32 0.0, %v1297
    %v1299 = vpop.f32.mrb[0].mxu0
    %1300 = vmatprep.mubr.bf16.mxu0 0
    %1301 = vmatmul.mubr.bf16.gmra.mrb[0].mxu0 %v1057
    %v1302 = vpop.f32.mrb[0].mxu0
    %v1303 = vadd.f32 0.0, %v1302
    %v1304 = vpop.f32.mrb[0].mxu0
    %v1305 = vpop.f32.mrb[0].mxu0
    %v1306 = vadd.f32 0.0, %v1305
    %v1307 = vpop.f32.mrb[0].mxu0
    %1308 = vmatprep.mubr.bf16.mxu0 0
    %1309 = vmatmul.mubr.bf16.gmra.mrb[0].mxu0 %v1059
    %v1310 = vpop.f32.mrb[0].mxu0
    %v1311 = vadd.f32 0.0, %v1310
    %v1312 = vpop.f32.mrb[0].mxu0
    %v1313 = vpop.f32.mrb[0].mxu0
    %v1314 = vadd.f32 0.0, %v1313
    %v1315 = vpop.f32.mrb[0].mxu0
    %1316 = vmatprep.mubr.bf16.mxu0 0
    %1317 = vmatmul.mubr.bf16.gmra.mrb[0].mxu0 %v1061
    %v1318 = vpop.f32.mrb[0].mxu0
    %v1319 = vadd.f32 0.0, %v1318
    %v1320 = vpop.f32.mrb[0].mxu0
    %v1321 = vpop.f32.mrb[0].mxu0
    %v1322 = vadd.f32 0.0, %v1321
    %v1323 = vpop.f32.mrb[0].mxu0
    %1324 = vdwg.mxu0
    %v1325 = vpack.c.bf16 %v1266, %v1263
    %v1326 = vpack.c.bf16 %v1274, %v1271
    %v1327 = vpack.c.bf16 %v1282, %v1279
    %v1328 = vpack.c.bf16 %v1290, %v1287
    %v1329 = vpack.c.bf16 %v1298, %v1295
    %v1330 = vpack.c.bf16 %v1306, %v1303
    %v1331 = vpack.c.bf16 %v1314, %v1311
    %v1332 = vpack.c.bf16 %v1322, %v1319
    %v1341 = vunpack.c.l.b16 %v1325
    %v1342 = vunpack.c.h.b16 %v1325
    %v1343 = vunpack.c.l.b16 %v1326
    %v1344 = vunpack.c.h.b16 %v1326
    %v1345 = vunpack.c.l.b16 %v1327
    %v1346 = vunpack.c.h.b16 %v1327
    %v1347 = vunpack.c.l.b16 %v1328
    %v1348 = vunpack.c.h.b16 %v1328
    %v1349 = vunpack.c.l.b16 %v1329
    %v1350 = vunpack.c.h.b16 %v1329
    %v1351 = vunpack.c.l.b16 %v1330
    %v1352 = vunpack.c.h.b16 %v1330
    %v1353 = vunpack.c.l.b16 %v1331
    %v1354 = vunpack.c.h.b16 %v1331
    %v1355 = vunpack.c.l.b16 %v1332
    %v1356 = vunpack.c.h.b16 %v1332
    %v1357 = vpack.c.b16 %v1341, %v1341
    %v1358 = vpack.c.b16 %v1342, %v1342
    %v1359 = vpack.c.b16 %v1343, %v1343
    %v1360 = vpack.c.b16 %v1344, %v1344
    %v1361 = vpack.c.b16 %v1345, %v1345
    %v1362 = vpack.c.b16 %v1346, %v1346
    %v1363 = vpack.c.b16 %v1347, %v1347
    %v1364 = vpack.c.b16 %v1348, %v1348
    %v1365 = vpack.c.b16 %v1349, %v1349
    %v1366 = vpack.c.b16 %v1350, %v1350
    %v1367 = vpack.c.b16 %v1351, %v1351
    %v1368 = vpack.c.b16 %v1352, %v1352
    %v1369 = vpack.c.b16 %v1353, %v1353
    %v1370 = vpack.c.b16 %v1354, %v1354
    %v1371 = vpack.c.b16 %v1355, %v1355
    %v1372 = vpack.c.b16 %v1356, %v1356
    %s1389 = scalar_lea.vmem %s5, 64
    %1390 = vst.msk [vmem:[%s1389] sm:$0xf] %vm809, %v1357
    %1391 = vst.msk [vmem:[%s1389 + $0x4] sm:$0xf] %vm809, %v1358
    %1392 = vst.msk [vmem:[%s1389 + $0x8] sm:$0xf] %vm809, %v1359
    %1393 = vst.msk [vmem:[%s1389 + $0xc] sm:$0xf] %vm809, %v1360
    %1394 = vst.msk [vmem:[%s1389 + $0x10] sm:$0xf] %vm809, %v1361
    %1395 = vst.msk [vmem:[%s1389 + $0x14] sm:$0xf] %vm809, %v1362
    %1396 = vst.msk [vmem:[%s1389 + $0x18] sm:$0xf] %vm809, %v1363
    %1397 = vst.msk [vmem:[%s1389 + $0x1c] sm:$0xf] %vm809, %v1364
    %1398 = vst.msk [vmem:[%s1389 + $0x20] sm:$0xf] %vm809, %v1365
    %1399 = vst.msk [vmem:[%s1389 + $0x24] sm:$0xf] %vm809, %v1366
    %1400 = vst.msk [vmem:[%s1389 + $0x28] sm:$0xf] %vm809, %v1367
    %1401 = vst.msk [vmem:[%s1389 + $0x2c] sm:$0xf] %vm809, %v1368
    %1402 = vst.msk [vmem:[%s1389 + $0x30] sm:$0xf] %vm809, %v1369
    %1403 = vst.msk [vmem:[%s1389 + $0x34] sm:$0xf] %vm809, %v1370
    %1404 = vst.msk [vmem:[%s1389 + $0x38] sm:$0xf] %vm809, %v1371
    %1405 = vst.msk [vmem:[%s1389 + $0x3c] sm:$0xf] %vm809, %v1372
    // Predicated region
    $region42: #{model_forward.1} parent=1 // pred_check
      _
    $region43: #{model_forward.1} parent=1 // pred_check_branch
      %1407 = sbr.rel (0) target = $region45
    $region44: #{model_forward.1} parent=1 // pred_region
      _
    $region45: #{model_forward.1} parent=1 // pred_fallthru
      _
    // Predicated region
    $region46: #{model_forward.1} parent=1 // pred_check
      _
    $region47: #{model_forward.1} parent=1 // pred_check_branch
      %1409 = sbr.rel (0) target = $region49
    $region48: #{model_forward.1} parent=1 // pred_region
      _
    $region49: #{model_forward.1} parent=1 // pred_fallthru
      _
    %1410 = vsyncpa [#allocation3], 1
    %1411 = vsyncpa [#allocation5], 1
    %1412 = vsyncpa [#allocation8], 1

</llo_original>
